<compile_context>
chip_gen: v5e
topology: v5e:2x2
jax: 0.10.0
libtpu: 0.0.40
codegen_flags: <defaults>
</compile_context>

<pallas_src>
import functools
import math

import jax
import jax.numpy as jnp
from jax.experimental import pallas as pl
from jax.experimental.pallas import tpu as pltpu

EPS = 1e-5          # InstanceNorm1d default eps
LRELU_SLOPE = 0.2
INV_SQRT2 = 1.0 / math.sqrt(2.0)


def _cond_embedding_kernel(idx_ref, mask_ref, style_ref,
                           etabT_ref, w1_ref, cb1_ref, w2_ref, cb2_ref,
                           out_ref, *scratch, t_real, fuse):
    C, V = etabT_ref.shape
    T = idx_ref.shape[-1]                 # padded length (multiple of 128)
    mm_dtype = etabT_ref.dtype
    padded = t_real != T                  # static python bool

    idx = idx_ref[0]                      # (1, T) int32
    mask = mask_ref[0]                    # (1, T) f32 (zero in padded region)
    style = style_ref[0]                  # (C, 4) f32: [(1+g1), b1, (1+g2), b2]
    g1, be1 = style[:, 0:1], style[:, 1:2]
    g2, be2 = style[:, 2:3], style[:, 3:4]

    t_iota = jax.lax.broadcasted_iota(jnp.int32, (1, T), 1)
    is_first = t_iota == 0
    is_last = t_iota == t_real - 1        # real conv right boundary
    validf = (t_iota < t_real).astype(jnp.float32) if padded else None
    inv_t = jnp.float32(1.0 / t_real)

    # --- nn.Embedding as one-hot matmul, directly in (C, T): (C,V)@(V,T) ---
    vocab_iota = jax.lax.broadcasted_iota(jnp.int32, (V, T), 0)
    onehot = (vocab_iota == idx).astype(mm_dtype)                            # (V, T)
    x = jnp.dot(etabT_ref[...], onehot, preferred_element_type=jnp.float32)  # (C, T) f32

    def adain(xin, g, b):
        # InstanceNorm1d(affine=False, eps=1e-5) over the REAL time axis + style affine.
        xm = xin * validf if padded else xin
        mean = jnp.sum(xm, axis=1, keepdims=True) * inv_t                    # (C, 1)
        diff = xin - mean
        if padded:
            diff = diff * validf
        var = jnp.sum(diff * diff, axis=1, keepdims=True) * inv_t            # biased
        xn = (xin - mean) * jax.lax.rsqrt(var + EPS)
        return g * xn + b

    def lrelu(v):
        return jnp.where(v >= 0.0, v, LRELU_SLOPE * v)

    zero = jnp.array(0, mm_dtype)

    def conv3(xin, w_ref, b_ref):
        # Conv1d(kernel=3, stride=1, pad=1) along time (lanes).
        if padded:
            xin = xin * validf                       # zero beyond real T (conv halo)
        xm = xin.astype(mm_dtype)                    # cast BEFORE rolls / edge masks
        x_prev = jnp.where(is_first, zero, pltpu.roll(xm, shift=1, axis=1))
        x_next = jnp.where(is_last, zero, pltpu.roll(xm, shift=T - 1, axis=1))
        if fuse:
            # Single (C, 3C) @ (3C, T) MXU push; taps staged in VMEM scratch
            # (sublane-aligned rows) instead of a concatenate copy.
            xcat_ref = scratch[0]
            xcat_ref[0:C, :] = x_prev
            xcat_ref[C:2 * C, :] = xm
            xcat_ref[2 * C:3 * C, :] = x_next
            out = jnp.dot(w_ref[...], xcat_ref[...],
                          preferred_element_type=jnp.float32)
        else:
            out = (jnp.dot(w_ref[0], x_prev, preferred_element_type=jnp.float32)
                   + jnp.dot(w_ref[1], xm, preferred_element_type=jnp.float32)
                   + jnp.dot(w_ref[2], x_next, preferred_element_type=jnp.float32))
        return out + b_ref[...]

    # Residual branch (dropout is identity at inference).
    h1 = conv3(lrelu(adain(x, g1, be1)), w1_ref, cb1_ref)
    h2 = conv3(lrelu(adain(h1, g2, be2)), w2_ref, cb2_ref)

    # Shortcut is identity (dim_in == dim_out, upsample='none').
    out = (h2 + x) * jnp.float32(INV_SQRT2)
    out_ref[0] = (out * mask).astype(out_ref.dtype)


def conditional_embedding(x_ids, x_mask, utt_emb, params, *,
                          matmul_dtype=jnp.bfloat16, out_dtype=jnp.float32):
    """x_ids: (B,T) int, x_mask: (B,1,T) f32, utt_emb: (B,S) f32 -> (B, d_model, T)."""
    B, T = x_ids.shape
    V, C = params["embed"].shape

    # --- pad T to a multiple of 128 (lane-dense loads/stores); fold into mask ---
    T_pad = max(128, ((T + 127) // 128) * 128)
    pad = T_pad - T
    ids = x_ids.astype(jnp.int32)
    mask = x_mask.astype(jnp.float32).reshape(B, 1, T)
    if pad:
        ids = jnp.pad(ids, ((0, 0), (0, pad)))
        mask = jnp.pad(mask, ((0, 0), (0, 0), (0, pad)))
    ids3 = ids[:, None, :]                                               # (B, 1, Tp)

    # --- hoisted AdaIN style FCs: one tiny (B,S)@(S,4C) GEMM outside the kernel ---
    fc_w = jnp.concatenate([params["fc1_w"], params["fc2_w"]], axis=0)   # (4C, S)
    fc_b = jnp.concatenate([params["fc1_b"], params["fc2_b"]], axis=0)   # (4C,)
    h = utt_emb.astype(jnp.float32) @ fc_w.astype(jnp.float32).T + fc_b  # (B, 4C)
    g1 = 1.0 + h[:, 0 * C:1 * C]
    be1 = h[:, 1 * C:2 * C]
    g2 = 1.0 + h[:, 2 * C:3 * C]
    be2 = h[:, 3 * C:4 * C]
    style = jnp.stack([g1, be1, g2, be2], axis=2)                        # (B, C, 4)

    etabT = params["embed"].T.astype(matmul_dtype)                       # (C, V)

    mm_isz = jnp.dtype(matmul_dtype).itemsize
    sub = 32 // mm_isz                               # sublane packing (8 f32 / 16 bf16)
    fuse = (3 * C <= 128) and (C % sub == 0)

    def prep_conv_w(w):                              # torch layout (C_out, C_in, 3)
        if fuse:
            # (C_out, 3*C_in): column block k*C_in + c_in == W[:, c_in, k]
            return jnp.transpose(w, (0, 2, 1)).reshape(C, 3 * C).astype(matmul_dtype)
        return jnp.transpose(w, (2, 0, 1)).astype(matmul_dtype)          # (3, Co, Ci)

    w1 = prep_conv_w(params["conv1_w"])
    w2 = prep_conv_w(params["conv2_w"])
    cb1 = params["conv1_b"].astype(jnp.float32)[:, None]                 # (C, 1)
    cb2 = params["conv2_b"].astype(jnp.float32)[:, None]

    per_b = lambda shp: pl.BlockSpec(shp, lambda b, _n=len(shp): (b,) + (0,) * (_n - 1))
    # Grid-invariant blocks: single-buffer (the pipeline never re-fetches them).
    const = lambda shp: pl.BlockSpec(shp, lambda b, _n=len(shp): (0,) * _n,
                                     pipeline_mode=pl.Buffered(1))
    w_spec = const((C, 3 * C)) if fuse else const((3, C, C))

    # Explicit VMEM budget (re-derived from shapes; headroom x2, clamped to 64 MiB).
    out_isz = jnp.dtype(out_dtype).itemsize
    est = (C * V * mm_isz + 2 * 3 * C * C * mm_isz + 2 * C * 4        # constants (1-buffered)
           + 2 * (T_pad * 4 + T_pad * 4 + C * 4 * 4)                  # ids/mask/style (2-buffered)
           + 2 * C * T_pad * out_isz                                  # output block (2-buffered)
           + 3 * C * T_pad * mm_isz                                   # fused-tap scratch
           + V * T_pad * mm_isz                                       # one-hot
           + 10 * C * T_pad * 4)                                      # live f32 intermediates
    vmem_limit = int(min(max(2 * est, 8 * 1024 * 1024), 64 * 1024 * 1024))

    scratch_shapes = [pltpu.VMEM((3 * C, T_pad), matmul_dtype)] if fuse else []
    kernel = functools.partial(_cond_embedding_kernel, t_real=T, fuse=fuse)

    out = pl.pallas_call(
        kernel,
        out_shape=jax.ShapeDtypeStruct((B, C, T_pad), out_dtype),
        grid=(B,),
        in_specs=[
            per_b((1, 1, T_pad)),                 # token ids (lane-major)
            per_b((1, 1, T_pad)),                 # mask (padding folded in)
            per_b((1, C, 4)),                     # packed style: (1+g1), b1, (1+g2), b2
            const((C, V)),                        # embedding table (transposed)
            w_spec, const((C, 1)),                # conv1 weight, bias
            w_spec, const((C, 1)),                # conv2 weight, bias
        ],
        out_specs=per_b((1, C, T_pad)),           # NCT output, lane-dense in T
        scratch_shapes=scratch_shapes,
        compiler_params=pltpu.CompilerParams(
            dimension_semantics=("parallel",),
            vmem_limit_bytes=vmem_limit),
    )(ids3, mask, style, etabT, w1, cb1, w2, cb2)

    return out[:, :, :T] if pad else out          # (B, C, T) — NCT


def conditional_embedding_ref(x_ids, x_mask, utt_emb, params):
    """Pure-JAX reference mirroring the PyTorch forward (NCT layout)."""
    C = params["embed"].shape[1]
    emb = jnp.take(params["embed"], x_ids, axis=0)        # (B, T, C)
    x = jnp.transpose(emb, (0, 2, 1))                     # (B, C, T)

    def adain(xin, fcw, fcb):
        h = utt_emb @ fcw.T + fcb                         # (B, 2C)
        gamma = h[:, :C][:, :, None]
        beta = h[:, C:][:, :, None]
        mean = jnp.mean(xin, axis=2, keepdims=True)
        var = jnp.mean((xin - mean) ** 2, axis=2, keepdims=True)
        xn = (xin - mean) * jax.lax.rsqrt(var + EPS)
        return (1.0 + gamma) * xn + beta

    lrelu = lambda v: jnp.where(v >= 0.0, v, LRELU_SLOPE * v)

    def conv(xin, w, b):
        out = jax.lax.conv_general_dilated(
            xin, w, window_strides=(1,), padding=((1, 1),),
            dimension_numbers=("NCH", "OIH", "NCH"))
        return out + b[None, :, None]

    h = conv(lrelu(adain(x, params["fc1_w"], params["fc1_b"])),
             params["conv1_w"], params["conv1_b"])
    h = conv(lrelu(adain(h, params["fc2_w"], params["fc2_b"])),
             params["conv2_w"], params["conv2_b"])
    out = (h + x) * jnp.float32(INV_SQRT2)
    return out * x_mask


if __name__ == "__main__":
    B = 2
    V = 24     # num_embeddings
    C = 32     # d_model
    S = 64     # style_dim (small vs. default 512)

    key = jax.random.PRNGKey(0)
    keys = jax.random.split(key, 12)

    # Deterministic synthetic parameters (weight_norm folded into plain weights).
    params = {
        "embed":   jax.random.normal(keys[0], (V, C), jnp.float32) * 0.5,
        "fc1_w":   jax.random.normal(keys[1], (2 * C, S), jnp.float32) * 0.1,
        "fc1_b":   jax.random.normal(keys[2], (2 * C,), jnp.float32) * 0.1,
        "fc2_w":   jax.random.normal(keys[3], (2 * C, S), jnp.float32) * 0.1,
        "fc2_b":   jax.random.normal(keys[4], (2 * C,), jnp.float32) * 0.1,
        "conv1_w": jax.random.normal(keys[5], (C, C, 3), jnp.float32) * 0.1,
        "conv1_b": jax.random.normal(keys[6], (C,), jnp.float32) * 0.1,
        "conv2_w": jax.random.normal(keys[7], (C, C, 3), jnp.float32) * 0.1,
        "conv2_b": jax.random.normal(keys[8], (C,), jnp.float32) * 0.1,
    }

    def run_case(T, matmul_dtype, atol, rtol):
        x_ids = jax.random.randint(keys[9], (B, T), 0, V, dtype=jnp.int32)
        lengths = jnp.array([T, T - 37], dtype=jnp.int32)
        x_mask = (jnp.arange(T)[None, :] < lengths[:, None]
                  ).astype(jnp.float32)[:, None, :]                    # (B, 1, T)
        utt_emb = jax.random.normal(keys[10], (B, S), jnp.float32)

        fn = jax.jit(functools.partial(conditional_embedding,
                                       matmul_dtype=matmul_dtype))
        out = jax.block_until_ready(fn(x_ids, x_mask, utt_emb, params))
        ref = conditional_embedding_ref(x_ids, x_mask, utt_emb, params)
        assert out.shape == (B, C, T), out.shape
        outf = out.astype(jnp.float32)
        max_err = float(jnp.max(jnp.abs(outf - ref)))
        assert jnp.allclose(outf, ref, atol=atol, rtol=rtol), (
            f"T={T} dtype={matmul_dtype} max_err={max_err}")

    # Exact check of the padded-T / masked-stats path with f32 MXU operands.
    run_case(192, jnp.float32, 1e-4, 1e-4)
    # Default bf16 MXU operands (production path), padded and lane-dense T.
    run_case(192, jnp.bfloat16, 5e-2, 5e-2)
    run_case(128, jnp.bfloat16, 5e-2, 5e-2)
    print("KERNEL_OK")
</pallas_src>

<mosaic_0001>
module attributes {stable_mosaic.version = 11 : i64} {
  func.func @_cond_embedding_kernel(%arg0: i32, %arg1: memref<1x1x256xi32, #tpu.memory_space<vmem>>, %arg2: memref<1x1x256xf32, #tpu.memory_space<vmem>>, %arg3: memref<1x32x4xf32, #tpu.memory_space<vmem>>, %arg4: memref<32x24xf32, #tpu.memory_space<vmem>>, %arg5: memref<32x96xf32, #tpu.memory_space<vmem>>, %arg6: memref<32x1xf32, #tpu.memory_space<vmem>>, %arg7: memref<32x96xf32, #tpu.memory_space<vmem>>, %arg8: memref<32x1xf32, #tpu.memory_space<vmem>>, %arg9: memref<1x32x256xf32, #tpu.memory_space<vmem>>, %arg10: memref<96x256xf32, #tpu.memory_space<vmem>>) attributes {dimension_semantics = [#tpu.dimension_semantics<parallel>], iteration_bounds = array<i64: 2>, scalar_prefetch = 0 : i64, scratch_operands = 1 : i64, tpu.core_type = #tpu.core_type<tc>, window_params = [{transform_indices = @transform_0, window_bounds = array<i64: 1, 1, 256>}, {transform_indices = @transform_1, window_bounds = array<i64: 1, 1, 256>}, {transform_indices = @transform_2, window_bounds = array<i64: 1, 32, 4>}, {pipeline_mode = #tpu.pipeline_mode<synchronous>, transform_indices = @transform_3, window_bounds = array<i64: 32, 24>}, {pipeline_mode = #tpu.pipeline_mode<synchronous>, transform_indices = @transform_4, window_bounds = array<i64: 32, 96>}, {pipeline_mode = #tpu.pipeline_mode<synchronous>, transform_indices = @transform_5, window_bounds = array<i64: 32, 1>}, {pipeline_mode = #tpu.pipeline_mode<synchronous>, transform_indices = @transform_6, window_bounds = array<i64: 32, 96>}, {pipeline_mode = #tpu.pipeline_mode<synchronous>, transform_indices = @transform_7, window_bounds = array<i64: 32, 1>}, {transform_indices = @transform_8, window_bounds = array<i64: 1, 32, 256>}]} {
    %c0 = arith.constant 0 : index
    %c0_0 = arith.constant 0 : index
    %c0_1 = arith.constant 0 : index
    %0 = vector.load %arg1[%c0, %c0_0, %c0_1] : memref<1x1x256xi32, #tpu.memory_space<vmem>>, vector<1x1x256xi32>
    %1 = vector.shape_cast %0 : vector<1x1x256xi32> to vector<1x256xi32>
    %c0_2 = arith.constant 0 : index
    %c0_3 = arith.constant 0 : index
    %c0_4 = arith.constant 0 : index
    %2 = vector.load %arg2[%c0_2, %c0_3, %c0_4] : memref<1x1x256xf32, #tpu.memory_space<vmem>>, vector<1x1x256xf32>
    %3 = vector.shape_cast %2 : vector<1x1x256xf32> to vector<1x256xf32>
    %c0_5 = arith.constant 0 : index
    %c0_6 = arith.constant 0 : index
    %c0_7 = arith.constant 0 : index
    %4 = vector.load %arg3[%c0_5, %c0_6, %c0_7] : memref<1x32x4xf32, #tpu.memory_space<vmem>>, vector<1x32x4xf32>
    %5 = vector.shape_cast %4 : vector<1x32x4xf32> to vector<32x4xf32>
    %6 = vector.extract_strided_slice %5 {offsets = [0, 0], sizes = [32, 1], strides = [1, 1]} : vector<32x4xf32> to vector<32x1xf32>
    %7 = vector.extract_strided_slice %5 {offsets = [0, 1], sizes = [32, 1], strides = [1, 1]} : vector<32x4xf32> to vector<32x1xf32>
    %8 = vector.extract_strided_slice %5 {offsets = [0, 2], sizes = [32, 1], strides = [1, 1]} : vector<32x4xf32> to vector<32x1xf32>
    %9 = vector.extract_strided_slice %5 {offsets = [0, 3], sizes = [32, 1], strides = [1, 1]} : vector<32x4xf32> to vector<32x1xf32>
    %10 = tpu.iota {dimensions = array<i32: 1>} : vector<1x256xi32>
    %c0_i32 = arith.constant 0 : i32
    %11 = vector.broadcast %c0_i32 : i32 to vector<1x256xi32>
    %12 = arith.cmpi eq, %10, %11 : vector<1x256xi32>
    %c191_i32 = arith.constant 191 : i32
    %13 = vector.broadcast %c191_i32 : i32 to vector<1x256xi32>
    %14 = arith.cmpi eq, %10, %13 : vector<1x256xi32>
    %c192_i32 = arith.constant 192 : i32
    %15 = vector.broadcast %c192_i32 : i32 to vector<1x256xi32>
    %16 = arith.cmpi slt, %10, %15 : vector<1x256xi32>
    %17 = arith.extui %16 : vector<1x256xi1> to vector<1x256xi32>
    %18 = arith.sitofp %17 : vector<1x256xi32> to vector<1x256xf32>
    %19 = tpu.iota {dimensions = array<i32: 0>} : vector<24x256xi32>
    %20 = vector.broadcast %1 : vector<1x256xi32> to vector<24x256xi32>
    %21 = arith.cmpi eq, %19, %20 : vector<24x256xi32>
    %22 = arith.extui %21 : vector<24x256xi1> to vector<24x256xi32>
    %23 = arith.sitofp %22 : vector<24x256xi32> to vector<24x256xf32>
    %c0_8 = arith.constant 0 : index
    %c0_9 = arith.constant 0 : index
    %24 = vector.load %arg4[%c0_8, %c0_9] : memref<32x24xf32, #tpu.memory_space<vmem>>, vector<32x24xf32>
    %cst = arith.constant dense<0.000000e+00> : vector<32x256xf32>
    %25 = tpu.matmul %24, %23, %cst {dimension_numbers = #tpu.dot_dimension_numbers<[1], [0], [0], [1], [0, 0, 1, 1], [], []>} : vector<32x24xf32>, vector<24x256xf32>, vector<32x256xf32> -> vector<32x256xf32>
    %26 = vector.broadcast %18 : vector<1x256xf32> to vector<32x256xf32>
    %27 = arith.mulf %25, %26 : vector<32x256xf32>
    %cst_10 = arith.constant dense<0.000000e+00> : vector<32xf32>
    %28 = vector.multi_reduction <add>, %27, %cst_10 [1] : vector<32x256xf32> to vector<32xf32>
    %29 = vector.shape_cast %28 : vector<32xf32> to vector<32x1xf32>
    %cst_11 = arith.constant 0.00520833349 : f32
    %30 = vector.broadcast %cst_11 : f32 to vector<32x1xf32>
    %31 = arith.mulf %29, %30 : vector<32x1xf32>
    %32 = vector.broadcast %31 : vector<32x1xf32> to vector<32x256xf32>
    %33 = arith.subf %25, %32 : vector<32x256xf32>
    %34 = vector.broadcast %18 : vector<1x256xf32> to vector<32x256xf32>
    %35 = arith.mulf %33, %34 : vector<32x256xf32>
    %36 = arith.mulf %35, %35 : vector<32x256xf32>
    %cst_12 = arith.constant dense<0.000000e+00> : vector<32xf32>
    %37 = vector.multi_reduction <add>, %36, %cst_12 [1] : vector<32x256xf32> to vector<32xf32>
    %38 = vector.shape_cast %37 : vector<32xf32> to vector<32x1xf32>
    %cst_13 = arith.constant 0.00520833349 : f32
    %39 = vector.broadcast %cst_13 : f32 to vector<32x1xf32>
    %40 = arith.mulf %38, %39 : vector<32x1xf32>
    %41 = vector.broadcast %31 : vector<32x1xf32> to vector<32x256xf32>
    %42 = arith.subf %25, %41 : vector<32x256xf32>
    %cst_14 = arith.constant 9.99999974E-6 : f32
    %43 = vector.broadcast %cst_14 : f32 to vector<32x1xf32>
    %44 = arith.addf %40, %43 : vector<32x1xf32>
    %45 = math.rsqrt %44 : vector<32x1xf32>
    %46 = vector.broadcast %45 : vector<32x1xf32> to vector<32x256xf32>
    %47 = arith.mulf %42, %46 : vector<32x256xf32>
    %48 = vector.broadcast %6 : vector<32x1xf32> to vector<32x256xf32>
    %49 = arith.mulf %48, %47 : vector<32x256xf32>
    %50 = vector.broadcast %7 : vector<32x1xf32> to vector<32x256xf32>
    %51 = arith.addf %49, %50 : vector<32x256xf32>
    %cst_15 = arith.constant 0.000000e+00 : f32
    %52 = vector.broadcast %cst_15 : f32 to vector<32x256xf32>
    %53 = arith.cmpf oge, %51, %52 : vector<32x256xf32>
    %cst_16 = arith.constant 2.000000e-01 : f32
    %54 = vector.broadcast %cst_16 : f32 to vector<32x256xf32>
    %55 = arith.mulf %54, %51 : vector<32x256xf32>
    %56 = arith.select %53, %51, %55 : vector<32x256xi1>, vector<32x256xf32>
    %57 = vector.broadcast %18 : vector<1x256xf32> to vector<32x256xf32>
    %58 = arith.mulf %56, %57 : vector<32x256xf32>
    %c1_i32 = arith.constant 1 : i32
    %59 = tpu.dynamic_rotate %58 by %c1_i32 dim 1 : vector<32x256xf32>, i32 -> vector<32x256xf32>
    %cst_17 = arith.constant 0.000000e+00 : f32
    %60 = vector.shape_cast %12 : vector<1x256xi1> to vector<1x256xi1>
    %61 = vector.broadcast %60 : vector<1x256xi1> to vector<32x256xi1>
    %62 = vector.broadcast %cst_17 : f32 to vector<32x256xf32>
    %63 = arith.select %61, %62, %59 : vector<32x256xi1>, vector<32x256xf32>
    %c255_i32 = arith.constant 255 : i32
    %64 = tpu.dynamic_rotate %58 by %c255_i32 dim 1 : vector<32x256xf32>, i32 -> vector<32x256xf32>
    %cst_18 = arith.constant 0.000000e+00 : f32
    %65 = vector.shape_cast %14 : vector<1x256xi1> to vector<1x256xi1>
    %66 = vector.broadcast %65 : vector<1x256xi1> to vector<32x256xi1>
    %67 = vector.broadcast %cst_18 : f32 to vector<32x256xf32>
    %68 = arith.select %66, %67, %64 : vector<32x256xi1>, vector<32x256xf32>
    %c0_19 = arith.constant 0 : index
    %c0_20 = arith.constant 0 : index
    %69 = vector.load %arg10[%c0_19, %c0_20] : memref<96x256xf32, #tpu.memory_space<vmem>>, vector<32x256xf32>
    tpu.vector_store %arg10[%c0_19, %c0_20], %63 {strides = array<i32>} : memref<96x256xf32, #tpu.memory_space<vmem>>, vector<32x256xf32>,
    %c32 = arith.constant 32 : index
    %c0_21 = arith.constant 0 : index
    %70 = vector.load %arg10[%c32, %c0_21] : memref<96x256xf32, #tpu.memory_space<vmem>>, vector<32x256xf32>
    tpu.vector_store %arg10[%c32, %c0_21], %58 {strides = array<i32>} : memref<96x256xf32, #tpu.memory_space<vmem>>, vector<32x256xf32>,
    %c64 = arith.constant 64 : index
    %c0_22 = arith.constant 0 : index
    %71 = vector.load %arg10[%c64, %c0_22] : memref<96x256xf32, #tpu.memory_space<vmem>>, vector<32x256xf32>
    tpu.vector_store %arg10[%c64, %c0_22], %68 {strides = array<i32>} : memref<96x256xf32, #tpu.memory_space<vmem>>, vector<32x256xf32>,
    %c0_23 = arith.constant 0 : index
    %c0_24 = arith.constant 0 : index
    %72 = vector.load %arg5[%c0_23, %c0_24] : memref<32x96xf32, #tpu.memory_space<vmem>>, vector<32x96xf32>
    %c0_25 = arith.constant 0 : index
    %c0_26 = arith.constant 0 : index
    %73 = vector.load %arg10[%c0_25, %c0_26] : memref<96x256xf32, #tpu.memory_space<vmem>>, vector<96x256xf32>
    %cst_27 = arith.constant dense<0.000000e+00> : vector<32x256xf32>
    %74 = tpu.matmul %72, %73, %cst_27 {dimension_numbers = #tpu.dot_dimension_numbers<[1], [0], [0], [1], [0, 0, 1, 1], [], []>} : vector<32x96xf32>, vector<96x256xf32>, vector<32x256xf32> -> vector<32x256xf32>
    %c0_28 = arith.constant 0 : index
    %c0_29 = arith.constant 0 : index
    %75 = vector.load %arg6[%c0_28, %c0_29] : memref<32x1xf32, #tpu.memory_space<vmem>>, vector<32x1xf32>
    %76 = vector.broadcast %75 : vector<32x1xf32> to vector<32x256xf32>
    %77 = arith.addf %74, %76 : vector<32x256xf32>
    %78 = vector.broadcast %18 : vector<1x256xf32> to vector<32x256xf32>
    %79 = arith.mulf %77, %78 : vector<32x256xf32>
    %cst_30 = arith.constant dense<0.000000e+00> : vector<32xf32>
    %80 = vector.multi_reduction <add>, %79, %cst_30 [1] : vector<32x256xf32> to vector<32xf32>
    %81 = vector.shape_cast %80 : vector<32xf32> to vector<32x1xf32>
    %cst_31 = arith.constant 0.00520833349 : f32
    %82 = vector.broadcast %cst_31 : f32 to vector<32x1xf32>
    %83 = arith.mulf %81, %82 : vector<32x1xf32>
    %84 = vector.broadcast %83 : vector<32x1xf32> to vector<32x256xf32>
    %85 = arith.subf %77, %84 : vector<32x256xf32>
    %86 = vector.broadcast %18 : vector<1x256xf32> to vector<32x256xf32>
    %87 = arith.mulf %85, %86 : vector<32x256xf32>
    %88 = arith.mulf %87, %87 : vector<32x256xf32>
    %cst_32 = arith.constant dense<0.000000e+00> : vector<32xf32>
    %89 = vector.multi_reduction <add>, %88, %cst_32 [1] : vector<32x256xf32> to vector<32xf32>
    %90 = vector.shape_cast %89 : vector<32xf32> to vector<32x1xf32>
    %cst_33 = arith.constant 0.00520833349 : f32
    %91 = vector.broadcast %cst_33 : f32 to vector<32x1xf32>
    %92 = arith.mulf %90, %91 : vector<32x1xf32>
    %93 = vector.broadcast %83 : vector<32x1xf32> to vector<32x256xf32>
    %94 = arith.subf %77, %93 : vector<32x256xf32>
    %cst_34 = arith.constant 9.99999974E-6 : f32
    %95 = vector.broadcast %cst_34 : f32 to vector<32x1xf32>
    %96 = arith.addf %92, %95 : vector<32x1xf32>
    %97 = math.rsqrt %96 : vector<32x1xf32>
    %98 = vector.broadcast %97 : vector<32x1xf32> to vector<32x256xf32>
    %99 = arith.mulf %94, %98 : vector<32x256xf32>
    %100 = vector.broadcast %8 : vector<32x1xf32> to vector<32x256xf32>
    %101 = arith.mulf %100, %99 : vector<32x256xf32>
    %102 = vector.broadcast %9 : vector<32x1xf32> to vector<32x256xf32>
    %103 = arith.addf %101, %102 : vector<32x256xf32>
    %cst_35 = arith.constant 0.000000e+00 : f32
    %104 = vector.broadcast %cst_35 : f32 to vector<32x256xf32>
    %105 = arith.cmpf oge, %103, %104 : vector<32x256xf32>
    %cst_36 = arith.constant 2.000000e-01 : f32
    %106 = vector.broadcast %cst_36 : f32 to vector<32x256xf32>
    %107 = arith.mulf %106, %103 : vector<32x256xf32>
    %108 = arith.select %105, %103, %107 : vector<32x256xi1>, vector<32x256xf32>
    %109 = vector.broadcast %18 : vector<1x256xf32> to vector<32x256xf32>
    %110 = arith.mulf %108, %109 : vector<32x256xf32>
    %c1_i32_37 = arith.constant 1 : i32
    %111 = tpu.dynamic_rotate %110 by %c1_i32_37 dim 1 : vector<32x256xf32>, i32 -> vector<32x256xf32>
    %cst_38 = arith.constant 0.000000e+00 : f32
    %112 = vector.shape_cast %12 : vector<1x256xi1> to vector<1x256xi1>
    %113 = vector.broadcast %112 : vector<1x256xi1> to vector<32x256xi1>
    %114 = vector.broadcast %cst_38 : f32 to vector<32x256xf32>
    %115 = arith.select %113, %114, %111 : vector<32x256xi1>, vector<32x256xf32>
    %c255_i32_39 = arith.constant 255 : i32
    %116 = tpu.dynamic_rotate %110 by %c255_i32_39 dim 1 : vector<32x256xf32>, i32 -> vector<32x256xf32>
    %cst_40 = arith.constant 0.000000e+00 : f32
    %117 = vector.shape_cast %14 : vector<1x256xi1> to vector<1x256xi1>
    %118 = vector.broadcast %117 : vector<1x256xi1> to vector<32x256xi1>
    %119 = vector.broadcast %cst_40 : f32 to vector<32x256xf32>
    %120 = arith.select %118, %119, %116 : vector<32x256xi1>, vector<32x256xf32>
    %c0_41 = arith.constant 0 : index
    %c0_42 = arith.constant 0 : index
    %121 = vector.load %arg10[%c0_41, %c0_42] : memref<96x256xf32, #tpu.memory_space<vmem>>, vector<32x256xf32>
    tpu.vector_store %arg10[%c0_41, %c0_42], %115 {strides = array<i32>} : memref<96x256xf32, #tpu.memory_space<vmem>>, vector<32x256xf32>,
    %c32_43 = arith.constant 32 : index
    %c0_44 = arith.constant 0 : index
    %122 = vector.load %arg10[%c32_43, %c0_44] : memref<96x256xf32, #tpu.memory_space<vmem>>, vector<32x256xf32>
    tpu.vector_store %arg10[%c32_43, %c0_44], %110 {strides = array<i32>} : memref<96x256xf32, #tpu.memory_space<vmem>>, vector<32x256xf32>,
    %c64_45 = arith.constant 64 : index
    %c0_46 = arith.constant 0 : index
    %123 = vector.load %arg10[%c64_45, %c0_46] : memref<96x256xf32, #tpu.memory_space<vmem>>, vector<32x256xf32>
    tpu.vector_store %arg10[%c64_45, %c0_46], %120 {strides = array<i32>} : memref<96x256xf32, #tpu.memory_space<vmem>>, vector<32x256xf32>,
    %c0_47 = arith.constant 0 : index
    %c0_48 = arith.constant 0 : index
    %124 = vector.load %arg7[%c0_47, %c0_48] : memref<32x96xf32, #tpu.memory_space<vmem>>, vector<32x96xf32>
    %c0_49 = arith.constant 0 : index
    %c0_50 = arith.constant 0 : index
    %125 = vector.load %arg10[%c0_49, %c0_50] : memref<96x256xf32, #tpu.memory_space<vmem>>, vector<96x256xf32>
    %cst_51 = arith.constant dense<0.000000e+00> : vector<32x256xf32>
    %126 = tpu.matmul %124, %125, %cst_51 {dimension_numbers = #tpu.dot_dimension_numbers<[1], [0], [0], [1], [0, 0, 1, 1], [], []>} : vector<32x96xf32>, vector<96x256xf32>, vector<32x256xf32> -> vector<32x256xf32>
    %c0_52 = arith.constant 0 : index
    %c0_53 = arith.constant 0 : index
    %127 = vector.load %arg8[%c0_52, %c0_53] : memref<32x1xf32, #tpu.memory_space<vmem>>, vector<32x1xf32>
    %128 = vector.broadcast %127 : vector<32x1xf32> to vector<32x256xf32>
    %129 = arith.addf %126, %128 : vector<32x256xf32>
    %130 = arith.addf %129, %25 : vector<32x256xf32>
    %cst_54 = arith.constant 0.707106769 : f32
    %131 = vector.broadcast %cst_54 : f32 to vector<32x256xf32>
    %132 = arith.mulf %130, %131 : vector<32x256xf32>
    %133 = vector.broadcast %3 : vector<1x256xf32> to vector<32x256xf32>
    %134 = arith.mulf %132, %133 : vector<32x256xf32>
    %c0_55 = arith.constant 0 : index
    %c0_56 = arith.constant 0 : index
    %c0_57 = arith.constant 0 : index
    %135 = vector.load %arg9[%c0_55, %c0_56, %c0_57] : memref<1x32x256xf32, #tpu.memory_space<vmem>>, vector<1x32x256xf32>
    %136 = vector.shape_cast %135 : vector<1x32x256xf32> to vector<32x256xf32>
    %137 = vector.shape_cast %134 : vector<32x256xf32> to vector<1x32x256xf32>
    tpu.vector_store %arg9[%c0_55, %c0_56, %c0_57], %137 {strides = array<i32>} : memref<1x32x256xf32, #tpu.memory_space<vmem>>, vector<1x32x256xf32>,
    return
  }
  func.func @transform_0(%arg0: i32) -> (i32, i32, i32) {
    %c0_i32 = arith.constant 0 : i32
    %c0_i32_0 = arith.constant 0 : i32
    %c0_i32_1 = arith.constant 0 : i32
    return %arg0, %c0_i32, %c0_i32_0 : i32, i32, i32
  }
  func.func @transform_1(%arg0: i32) -> (i32, i32, i32) {
    %c0_i32 = arith.constant 0 : i32
    %c0_i32_0 = arith.constant 0 : i32
    %c0_i32_1 = arith.constant 0 : i32
    return %arg0, %c0_i32, %c0_i32_0 : i32, i32, i32
  }
  func.func @transform_2(%arg0: i32) -> (i32, i32, i32) {
    %c0_i32 = arith.constant 0 : i32
    %c0_i32_0 = arith.constant 0 : i32
    %c0_i32_1 = arith.constant 0 : i32
    return %arg0, %c0_i32, %c0_i32_0 : i32, i32, i32
  }
  func.func @transform_3(%arg0: i32) -> (i32, i32) {
    %c0_i32 = arith.constant 0 : i32
    %c0_i32_0 = arith.constant 0 : i32
    %c0_i32_1 = arith.constant 0 : i32
    return %c0_i32, %c0_i32_0 : i32, i32
  }
  func.func @transform_4(%arg0: i32) -> (i32, i32) {
    %c0_i32 = arith.constant 0 : i32
    %c0_i32_0 = arith.constant 0 : i32
    %c0_i32_1 = arith.constant 0 : i32
    return %c0_i32, %c0_i32_0 : i32, i32
  }
  func.func @transform_5(%arg0: i32) -> (i32, i32) {
    %c0_i32 = arith.constant 0 : i32
    %c0_i32_0 = arith.constant 0 : i32
    %c0_i32_1 = arith.constant 0 : i32
    return %c0_i32, %c0_i32_0 : i32, i32
  }
  func.func @transform_6(%arg0: i32) -> (i32, i32) {
    %c0_i32 = arith.constant 0 : i32
    %c0_i32_0 = arith.constant 0 : i32
    %c0_i32_1 = arith.constant 0 : i32
    return %c0_i32, %c0_i32_0 : i32, i32
  }
  func.func @transform_7(%arg0: i32) -> (i32, i32) {
    %c0_i32 = arith.constant 0 : i32
    %c0_i32_0 = arith.constant 0 : i32
    %c0_i32_1 = arith.constant 0 : i32
    return %c0_i32, %c0_i32_0 : i32, i32
  }
  func.func @transform_8(%arg0: i32) -> (i32, i32, i32) {
    %c0_i32 = arith.constant 0 : i32
    %c0_i32_0 = arith.constant 0 : i32
    %c0_i32_1 = arith.constant 0 : i32
    return %arg0, %c0_i32, %c0_i32_0 : i32, i32, i32
  }
}

</mosaic_0001>

<llo_original>
// kernel: conditional_embedding.1
$region0: #{conditional_embedding.1}
  #allocation0 [shape = 'u32[]', space=smem, size = 0x4, offset = 0x4, fixed_abs, tag = 'smem constant byte address 0x4 - core index']
  #allocation1 [shape = 'u32[72,128]{1,0:T(1,128)}', space=vmem, size = 0x9000, scoped, tag = 'internal scratch']
  #allocation2 [shape = 'f32[96,256]{1,0:T(8,128)}', space=vmem, size = 0x18000, scoped, tag = 'scratch operand']
  %s0 = inlined_call_operand.vmem [shape: s32[2,1,256], index: 0, kind: input, shape index: {}]
  %s1 = inlined_call_operand.vmem [shape: f32[2,1,256], index: 1, kind: input, shape index: {}]
  %s2 = inlined_call_operand.vmem [shape: f32[2,32,4], index: 2, kind: input, shape index: {}]
  %s3 = inlined_call_operand.vmem [shape: f32[32,24], index: 3, kind: input, shape index: {}]
  %s4 = inlined_call_operand.vmem [shape: f32[32,96], index: 4, kind: input, shape index: {}]
  %s5 = inlined_call_operand.vmem [shape: f32[32,1], index: 5, kind: input, shape index: {}]
  %s6 = inlined_call_operand.vmem [shape: f32[32,96], index: 6, kind: input, shape index: {}]
  %s7 = inlined_call_operand.vmem [shape: f32[32,1], index: 7, kind: input, shape index: {}]
  %s8 = inlined_call_operand.hbm [shape: f32[2,32,256], index: 8, kind: output, shape index: {}]
  %s9 = sld [smem:[#allocation0]]
  $region65: #{conditional_embedding.1} parent=0
    _
  %s11 = ssub.s32 1, %s9
  %s12 = scalar_select 0, %s11, %s9
  $region1: #{conditional_embedding.1} parent=0
    #allocation3 [shape = 'u8[65536]{0}', space=vmem, size = 0x10000, scoped, tag = 'output window, operand 0']
    #allocation4 [shape = 's32[2]{0}', space=sflag, size = 0x8, scoped, tag = 'scoped memory for conditional_embedding.1']
    %13 = vsyncpa [#allocation4], 0
    %s14 = scalar_lea.sflag [#allocation4], 1
    %15 = vsyncpa %s14, 0
    loop: start=0, step=1, limit=4
    $region2: #{conditional_embedding.1} parent=1 // loop_pre_header
      _
    $region3: #{conditional_embedding.1} parent=1 // loop_header
      %s17 = sphi 0, %s21
      %p18 = scmp.ge.s32.totalorder %s17, 4
      %s27 = sphi 0, %s29
      %s30 = sphi 0, %s27
      %s31 = sphi 0, %s30
      %s47 = sphi 0, %s31
      %s53 = sphi 0, %s55
      %s56 = sphi 0, %s53
      %s57 = sphi 0, %s56
      %s73 = sphi 0, %s57
      %s79 = sphi 0, %s81
      %s82 = sphi 0, %s79
      %s83 = sphi 0, %s82
      %s99 = sphi 0, %s83
      %s103 = sphi 0, %s103
      %s105 = sphi 0, %s103
      %s106 = sphi 0, %s105
      %s120 = sphi 0, %s106
      %s124 = sphi 0, %s124
      %s126 = sphi 0, %s124
      %s127 = sphi 0, %s126
      %s141 = sphi 0, %s127
      %s145 = sphi 0, %s145
      %s147 = sphi 0, %s145
      %s148 = sphi 0, %s147
      %s162 = sphi 0, %s148
      %s166 = sphi 0, %s166
      %s168 = sphi 0, %s166
      %s169 = sphi 0, %s168
      %s183 = sphi 0, %s169
      %s187 = sphi 0, %s187
      %s189 = sphi 0, %s187
      %s190 = sphi 0, %s189
      %s204 = sphi 0, %s190
      %s210 = sphi 0, %s212
      %s213 = sphi 0, %s210
      %s214 = sphi 0, %s213
      %s230 = sphi 0, %s214
    $region4: #{conditional_embedding.1} parent=1 // loop_header_branch
      %20 = sbr.rel (%p18) target = $region8
    $region5: #{conditional_embedding.1} parent=1 // loop_body
      %s22 = ssub.s32 %s17, 1
      %s23 = ssub.s32 %s17, 2
      %s24 = sadd.s32 %s17, 1
      %s25 = ssub.s32 %s17, %s24
      %p26 = scmp.eq.s32.totalorder %s25, 0
      %s28 = sadd.s32 %s27, 1
      %s29 = scalar_select %p26, %s27, %s28
      %p32 = pneg %p26
      %p33 = scmp.eq.s32.totalorder %s17, 1
      %p34 = por %p32, %p33
      %p35 = scmp.ne.s32.totalorder %s27, %s30
      %p36 = scmp.eq.s32.totalorder %s17, 0
      %p37 = por %p35, %p36
      %p38 = scmp.ne.s32.totalorder %s27, %s30
      %p39 = scmp.eq.s32.totalorder %s22, 1
      %p40 = por %p38, %p39
      %p41 = scmp.ne.s32.totalorder %s30, %s31
      %p42 = scmp.eq.s32.totalorder %s22, 0
      %p43 = por %p41, %p42
      %p44 = scmp.ne.s32.totalorder %s30, %s31
      %p45 = scmp.eq.s32.totalorder %s23, 1
      %p46 = por %p44, %p45
      %p48 = scmp.ne.s32.totalorder %s31, %s47
      %p49 = scmp.eq.s32.totalorder %s23, 0
      %p50 = por %p48, %p49
      %s51 = ssub.s32 %s17, %s24
      %p52 = scmp.eq.s32.totalorder %s51, 0
      %s54 = sadd.s32 %s53, 1
      %s55 = scalar_select %p52, %s53, %s54
      %p58 = pneg %p52
      %p59 = scmp.eq.s32.totalorder %s17, 1
      %p60 = por %p58, %p59
      %p61 = scmp.ne.s32.totalorder %s53, %s56
      %p62 = scmp.eq.s32.totalorder %s17, 0
      %p63 = por %p61, %p62
      %p64 = scmp.ne.s32.totalorder %s53, %s56
      %p65 = scmp.eq.s32.totalorder %s22, 1
      %p66 = por %p64, %p65
      %p67 = scmp.ne.s32.totalorder %s56, %s57
      %p68 = scmp.eq.s32.totalorder %s22, 0
      %p69 = por %p67, %p68
      %p70 = scmp.ne.s32.totalorder %s56, %s57
      %p71 = scmp.eq.s32.totalorder %s23, 1
      %p72 = por %p70, %p71
      %p74 = scmp.ne.s32.totalorder %s57, %s73
      %p75 = scmp.eq.s32.totalorder %s23, 0
      %p76 = por %p74, %p75
      %s77 = ssub.s32 %s17, %s24
      %p78 = scmp.eq.s32.totalorder %s77, 0
      %s80 = sadd.s32 %s79, 1
      %s81 = scalar_select %p78, %s79, %s80
      %p84 = pneg %p78
      %p85 = scmp.eq.s32.totalorder %s17, 1
      %p86 = por %p84, %p85
      %p87 = scmp.ne.s32.totalorder %s79, %s82
      %p88 = scmp.eq.s32.totalorder %s17, 0
      %p89 = por %p87, %p88
      %p90 = scmp.ne.s32.totalorder %s79, %s82
      %p91 = scmp.eq.s32.totalorder %s22, 1
      %p92 = por %p90, %p91
      %p93 = scmp.ne.s32.totalorder %s82, %s83
      %p94 = scmp.eq.s32.totalorder %s22, 0
      %p95 = por %p93, %p94
      %p96 = scmp.ne.s32.totalorder %s82, %s83
      %p97 = scmp.eq.s32.totalorder %s23, 1
      %p98 = por %p96, %p97
      %p100 = scmp.ne.s32.totalorder %s83, %s99
      %p101 = scmp.eq.s32.totalorder %s23, 0
      %p102 = por %p100, %p101
      %s104 = sadd.s32 %s103, 1
      %p107 = scmp.eq.s32.totalorder %s17, 1
      %p108 = scmp.ne.s32.totalorder %s103, %s105
      %p109 = scmp.eq.s32.totalorder %s17, 0
      %p110 = por %p108, %p109
      %p111 = scmp.ne.s32.totalorder %s103, %s105
      %p112 = scmp.eq.s32.totalorder %s22, 1
      %p113 = por %p111, %p112
      %p114 = scmp.ne.s32.totalorder %s105, %s106
      %p115 = scmp.eq.s32.totalorder %s22, 0
      %p116 = por %p114, %p115
      %p117 = scmp.ne.s32.totalorder %s105, %s106
      %p118 = scmp.eq.s32.totalorder %s23, 1
      %p119 = por %p117, %p118
      %p121 = scmp.ne.s32.totalorder %s106, %s120
      %p122 = scmp.eq.s32.totalorder %s23, 0
      %p123 = por %p121, %p122
      %s125 = sadd.s32 %s124, 1
      %p128 = scmp.eq.s32.totalorder %s17, 1
      %p129 = scmp.ne.s32.totalorder %s124, %s126
      %p130 = scmp.eq.s32.totalorder %s17, 0
      %p131 = por %p129, %p130
      %p132 = scmp.ne.s32.totalorder %s124, %s126
      %p133 = scmp.eq.s32.totalorder %s22, 1
      %p134 = por %p132, %p133
      %p135 = scmp.ne.s32.totalorder %s126, %s127
      %p136 = scmp.eq.s32.totalorder %s22, 0
      %p137 = por %p135, %p136
      %p138 = scmp.ne.s32.totalorder %s126, %s127
      %p139 = scmp.eq.s32.totalorder %s23, 1
      %p140 = por %p138, %p139
      %p142 = scmp.ne.s32.totalorder %s127, %s141
      %p143 = scmp.eq.s32.totalorder %s23, 0
      %p144 = por %p142, %p143
      %s146 = sadd.s32 %s145, 1
      %p149 = scmp.eq.s32.totalorder %s17, 1
      %p150 = scmp.ne.s32.totalorder %s145, %s147
      %p151 = scmp.eq.s32.totalorder %s17, 0
      %p152 = por %p150, %p151
      %p153 = scmp.ne.s32.totalorder %s145, %s147
      %p154 = scmp.eq.s32.totalorder %s22, 1
      %p155 = por %p153, %p154
      %p156 = scmp.ne.s32.totalorder %s147, %s148
      %p157 = scmp.eq.s32.totalorder %s22, 0
      %p158 = por %p156, %p157
      %p159 = scmp.ne.s32.totalorder %s147, %s148
      %p160 = scmp.eq.s32.totalorder %s23, 1
      %p161 = por %p159, %p160
      %p163 = scmp.ne.s32.totalorder %s148, %s162
      %p164 = scmp.eq.s32.totalorder %s23, 0
      %p165 = por %p163, %p164
      %s167 = sadd.s32 %s166, 1
      %p170 = scmp.eq.s32.totalorder %s17, 1
      %p171 = scmp.ne.s32.totalorder %s166, %s168
      %p172 = scmp.eq.s32.totalorder %s17, 0
      %p173 = por %p171, %p172
      %p174 = scmp.ne.s32.totalorder %s166, %s168
      %p175 = scmp.eq.s32.totalorder %s22, 1
      %p176 = por %p174, %p175
      %p177 = scmp.ne.s32.totalorder %s168, %s169
      %p178 = scmp.eq.s32.totalorder %s22, 0
      %p179 = por %p177, %p178
      %p180 = scmp.ne.s32.totalorder %s168, %s169
      %p181 = scmp.eq.s32.totalorder %s23, 1
      %p182 = por %p180, %p181
      %p184 = scmp.ne.s32.totalorder %s169, %s183
      %p185 = scmp.eq.s32.totalorder %s23, 0
      %p186 = por %p184, %p185
      %s188 = sadd.s32 %s187, 1
      %p191 = scmp.eq.s32.totalorder %s17, 1
      %p192 = scmp.ne.s32.totalorder %s187, %s189
      %p193 = scmp.eq.s32.totalorder %s17, 0
      %p194 = por %p192, %p193
      %p195 = scmp.ne.s32.totalorder %s187, %s189
      %p196 = scmp.eq.s32.totalorder %s22, 1
      %p197 = por %p195, %p196
      %p198 = scmp.ne.s32.totalorder %s189, %s190
      %p199 = scmp.eq.s32.totalorder %s22, 0
      %p200 = por %p198, %p199
      %p201 = scmp.ne.s32.totalorder %s189, %s190
      %p202 = scmp.eq.s32.totalorder %s23, 1
      %p203 = por %p201, %p202
      %p205 = scmp.ne.s32.totalorder %s190, %s204
      %p206 = scmp.eq.s32.totalorder %s23, 0
      %p207 = por %p205, %p206
      %s208 = ssub.s32 %s17, %s24
      %p209 = scmp.eq.s32.totalorder %s208, 0
      %s211 = sadd.s32 %s210, 1
      %s212 = scalar_select %p209, %s210, %s211
      %p215 = pneg %p209
      %p216 = scmp.eq.s32.totalorder %s17, 1
      %p217 = por %p215, %p216
      %p218 = scmp.ne.s32.totalorder %s210, %s213
      %p219 = scmp.eq.s32.totalorder %s17, 0
      %p220 = por %p218, %p219
      %p221 = scmp.ne.s32.totalorder %s210, %s213
      %p222 = scmp.eq.s32.totalorder %s22, 1
      %p223 = por %p221, %p222
      %p224 = scmp.ne.s32.totalorder %s213, %s214
      %p225 = scmp.eq.s32.totalorder %s22, 0
      %p226 = por %p224, %p225
      %p227 = scmp.ne.s32.totalorder %s213, %s214
      %p228 = scmp.eq.s32.totalorder %s23, 1
      %p229 = por %p227, %p228
      %p231 = scmp.ne.s32.totalorder %s214, %s230
      %p232 = scmp.eq.s32.totalorder %s23, 0
      %p233 = por %p231, %p232
      %p234 = scmp.le.s32.totalorder 1, %s17
      %p235 = scmp.lt.s32.totalorder %s17, 3
      %p236 = pnand %p234, %p235
      %p237 = pneg %p236
      // Predicated region
      $region9: #{conditional_embedding.1} parent=5 // pred_check
        _
      $region10: #{conditional_embedding.1} parent=5 // pred_check_branch
        %239 = sbr.rel (%p236) target = $region12
      $region11: #{conditional_embedding.1} parent=5 // pred_region
        %s240 = ssub.s32 %s17, 1
        // Predicated region
        $region13: #{conditional_embedding.1} parent=11 // pred_check
          %p241 = pneg %p116
        $region14: #{conditional_embedding.1} parent=11 // pred_check_branch
          %243 = sbr.rel (%p241) target = $region16
        $region15: #{conditional_embedding.1} parent=11 // pred_region
          _
        $region16: #{conditional_embedding.1} parent=11 // pred_fallthru
          _
        // Predicated region
        $region17: #{conditional_embedding.1} parent=11 // pred_check
          %p244 = pneg %p137
        $region18: #{conditional_embedding.1} parent=11 // pred_check_branch
          %246 = sbr.rel (%p244) target = $region20
        $region19: #{conditional_embedding.1} parent=11 // pred_region
          _
        $region20: #{conditional_embedding.1} parent=11 // pred_fallthru
          _
        // Predicated region
        $region21: #{conditional_embedding.1} parent=11 // pred_check
          %p247 = pneg %p158
        $region22: #{conditional_embedding.1} parent=11 // pred_check_branch
          %249 = sbr.rel (%p247) target = $region24
        $region23: #{conditional_embedding.1} parent=11 // pred_region
          _
        $region24: #{conditional_embedding.1} parent=11 // pred_fallthru
          _
        // Predicated region
        $region25: #{conditional_embedding.1} parent=11 // pred_check
          %p250 = pneg %p179
        $region26: #{conditional_embedding.1} parent=11 // pred_check_branch
          %252 = sbr.rel (%p250) target = $region28
        $region27: #{conditional_embedding.1} parent=11 // pred_region
          _
        $region28: #{conditional_embedding.1} parent=11 // pred_fallthru
          _
        // Predicated region
        $region29: #{conditional_embedding.1} parent=11 // pred_check
          %p253 = pneg %p200
        $region30: #{conditional_embedding.1} parent=11 // pred_check_branch
          %255 = sbr.rel (%p253) target = $region32
        $region31: #{conditional_embedding.1} parent=11 // pred_region
          _
        $region32: #{conditional_embedding.1} parent=11 // pred_fallthru
          _
      $region12: #{conditional_embedding.1} parent=5 // pred_fallthru
        _
      %p256 = scmp.lt.s32.totalorder %s17, 2
      // Predicated region
      $region33: #{conditional_embedding.1} parent=5 // pred_check
        %p257 = pneg %p256
      $region34: #{conditional_embedding.1} parent=5 // pred_check_branch
        %259 = sbr.rel (%p257) target = $region36
      $region35: #{conditional_embedding.1} parent=5 // pred_region
        // Predicated region
        $region37: #{conditional_embedding.1} parent=35 // pred_check
          %p260 = pneg %p37
        $region38: #{conditional_embedding.1} parent=35 // pred_check_branch
          %262 = sbr.rel (%p260) target = $region40
        $region39: #{conditional_embedding.1} parent=35 // pred_region
          %p263 = scmp.lt.s32.totalorder %s17, 1
          %s264 = scalar_select %p263, %s17, 1
          %s265 = smul.addr %s264, 2
          %s266 = scalar_lea.vmem %s0, %s265
        $region40: #{conditional_embedding.1} parent=35 // pred_fallthru
          _
        // Predicated region
        $region41: #{conditional_embedding.1} parent=35 // pred_check
          %p267 = pneg %p63
        $region42: #{conditional_embedding.1} parent=35 // pred_check_branch
          %269 = sbr.rel (%p267) target = $region44
        $region43: #{conditional_embedding.1} parent=35 // pred_region
          %p270 = scmp.lt.s32.totalorder %s17, 1
          %s271 = scalar_select %p270, %s17, 1
          %s272 = smul.addr %s271, 2
          %s273 = scalar_lea.vmem %s1, %s272
        $region44: #{conditional_embedding.1} parent=35 // pred_fallthru
          _
        // Predicated region
        $region45: #{conditional_embedding.1} parent=35 // pred_check
          %p274 = pneg %p89
        $region46: #{conditional_embedding.1} parent=35 // pred_check_branch
          %276 = sbr.rel (%p274) target = $region48
        $region47: #{conditional_embedding.1} parent=35 // pred_region
          %p277 = scmp.lt.s32.totalorder %s17, 1
          %s278 = scalar_select %p277, %s17, 1
          %s279 = smul.addr %s278, 4
          %s280 = smul.addr %s279, 8
          %s281 = scalar_lea.vmem %s2, %s280
        $region48: #{conditional_embedding.1} parent=35 // pred_fallthru
          _
      $region36: #{conditional_embedding.1} parent=5 // pred_fallthru
        _
      %p282 = scmp.le.s32.totalorder 1, %s17
      %p283 = scmp.lt.s32.totalorder %s17, 3
      %p284 = pnand %p282, %p283
      %p285 = pneg %p284
      // Predicated region
      $region49: #{conditional_embedding.1} parent=5 // pred_check
        _
      $region50: #{conditional_embedding.1} parent=5 // pred_check_branch
        %287 = sbr.rel (%p284) target = $region52
      $region51: #{conditional_embedding.1} parent=5 // pred_region
        %s288 = ssub.s32 %s17, 1
        %p289 = scmp.lt.s32.totalorder %s22, 1
        %s290 = scalar_select %p289, %s22, 1
        %s291 = smul.addr %s290, 2
        %s292 = scalar_lea.vmem %s0, %s291
        %p293 = pneg %p43
        %p294 = pneg %p40
        %p295 = scmp.lt.s32.totalorder %s22, 1
        %s296 = scalar_select %p295, %s22, 1
        %s297 = smul.addr %s296, 2
        %s298 = scalar_lea.vmem %s1, %s297
        %p299 = pneg %p69
        %p300 = pneg %p66
        %p301 = scmp.lt.s32.totalorder %s22, 1
        %s302 = scalar_select %p301, %s22, 1
        %s303 = smul.addr %s302, 4
        %s304 = smul.addr %s303, 8
        %s305 = scalar_lea.vmem %s2, %s304
        %p306 = pneg %p95
        %p307 = pneg %p92
        %p308 = pneg %p116
        %p309 = pneg %p113
        %p310 = pneg %p137
        %p311 = pneg %p134
        %p312 = pneg %p158
        %p313 = pneg %p155
        %p314 = pneg %p179
        %p315 = pneg %p176
        %p316 = pneg %p200
        %p317 = pneg %p197
        %p318 = pneg %p226
        %p319 = pneg %p223
        %s320 = sand.u32 %s213, 1
        %s321 = scalar_lea.sflag [#allocation4], %s320
        %s322 = sand.u32 %s213, 1
        %s323 = smul.addr %s322, 64
        %s324 = scalar_lea.vmem [#allocation3], %s323
        %p325 = scmp.lt.s32.totalorder %s22, 1
        %s326 = scalar_select %p325, %s22, 1
        %s327 = smul.addr %s326, 2
        %s328 = scalar_lea.vmem %s0, %s327
        %p329 = scmp.lt.s32.totalorder %s22, 1
        %s330 = scalar_select %p329, %s22, 1
        %s331 = smul.addr %s330, 2
        %s332 = scalar_lea.vmem %s1, %s331
        %p333 = scmp.lt.s32.totalorder %s22, 1
        %s334 = scalar_select %p333, %s22, 1
        %s335 = smul.addr %s334, 4
        %s336 = smul.addr %s335, 8
        %s337 = scalar_lea.vmem %s2, %s336
        %v338 = vld [vmem:[%s328] sm:$0x3]
        %v339 = vld [vmem:[%s332] sm:$0x3]
        %v340 = vld [vmem:[%s337] sm:$0xff]
        %v341 = vld [vmem:[%s337 + $0x8] sm:$0xff]
        %v342 = vld [vmem:[%s337 + $0x10] sm:$0xff]
        %v343 = vld [vmem:[%s337 + $0x18] sm:$0xff]
        %v344 = vlaneseq
        %v345 = vand.u32 %v344, 127
        %v346 = vadd.s32 %v345, 128
        %vm347 = vcmp.eq.s32.totalorder %v345, 0
        %vm348 = vcmp.eq.s32.totalorder %v346, 0
        %vm349 = vcmp.eq.s32.totalorder %v345, 191
        %vm350 = vcmp.eq.s32.totalorder %v346, 191
        %vm351 = vcmp.lt.s32.totalorder %v345, 192
        %vm352 = vcmp.lt.s32.totalorder %v346, 192
        %v353 = vsel %vm351, 1, 0
        %v354 = vsel %vm352, 1, 0
        %v355 = vcvt.s32.f32 %v353
        %v356 = vcvt.s32.f32 %v354
        %v357 = vlaneseq
        %v358 = vshrl.u32 %v357, 7
        %v359 = vadd.s32 %v358, 8
        %v360 = vadd.s32 %v358, 16
        %v361 = vperm.slane %v338, 0
        %v362 = vperm.slane %v338, 1
        %vm363 = vcmp.eq.s32.totalorder %v358, %v361
        %vm364 = vcmp.eq.s32.totalorder %v358, %v362
        %vm365 = vcmp.eq.s32.totalorder %v359, %v361
        %vm366 = vcmp.eq.s32.totalorder %v359, %v362
        %vm367 = vcmp.eq.s32.totalorder %v360, %v361
        %vm368 = vcmp.eq.s32.totalorder %v360, %v362
        %v369 = vsel %vm363, 1, 0
        %v370 = vsel %vm364, 1, 0
        %v371 = vsel %vm365, 1, 0
        %v372 = vsel %vm366, 1, 0
        %v373 = vsel %vm367, 1, 0
        %v374 = vsel %vm368, 1, 0
        %v375 = vcvt.s32.f32 %v369
        %v376 = vcvt.s32.f32 %v370
        %v377 = vcvt.s32.f32 %v371
        %v378 = vcvt.s32.f32 %v372
        %v379 = vcvt.s32.f32 %v373
        %v380 = vcvt.s32.f32 %v374
        %v381 = vld [vmem:[%s3] sm:$0xff]
        %v382 = vld [vmem:[%s3 + $0x8] sm:$0xff]
        %v383 = vld [vmem:[%s3 + $0x10] sm:$0xff]
        %v384 = vld [vmem:[%s3 + $0x18] sm:$0xff]
        %vm385 = vcmask 195584
        %v387 = vsel %vm385, %v381, 0
        %v390 = vsel %vm385, %v382, 0
        %v393 = vsel %vm385, %v383, 0
        %v396 = vsel %vm385, %v384, 0
        %398 = vmatpush.msra.mxu0 0.0
        %399 = vmatpush.msra.mxu0 0.0
        %400 = vmatpush.msra.mxu0 0.0
        %401 = vmatpush.msra.mxu0 0.0
        %402 = vmatpush.msra.mxu0 0.0
        %403 = vmatpush.msra.mxu0 0.0
        %404 = vmatpush.msra.mxu0 0.0
        %405 = vmatpush.msra.mxu0 0.0
        %406 = vmatpush.msra.mxu0 0.0
        %407 = vmatpush.msra.mxu0 0.0
        %408 = vmatpush.msra.mxu0 0.0
        %409 = vmatpush.msra.mxu0 0.0
        %410 = vmatpush.msra.mxu0 0.0
        %411 = vmatpush.msra.mxu0 %v379
        %412 = vmatpush.msra.mxu0 %v377
        %413 = vmatpush.msra.mxu0 %v375
        %414 = vmatmul.f32.gmra.mxu0 %v387
        %v415 = vpop.f32.mrf.mxu0
        %v416 = vadd.f32 0.0, %v415
        %417 = vmatmul.f32.gmra.mxu0 %v390
        %v418 = vpop.f32.mrf.mxu0
        %v419 = vadd.f32 0.0, %v418
        %420 = vmatmul.f32.gmra.mxu0 %v393
        %v421 = vpop.f32.mrf.mxu0
        %v422 = vadd.f32 0.0, %v421
        %423 = vmatmul.f32.gmra.mxu0 %v396
        %v424 = vpop.f32.mrf.mxu0
        %v425 = vadd.f32 0.0, %v424
        %426 = vdwg.mxu0
        %427 = vmatpush.msra.mxu0 0.0
        %428 = vmatpush.msra.mxu0 0.0
        %429 = vmatpush.msra.mxu0 0.0
        %430 = vmatpush.msra.mxu0 0.0
        %431 = vmatpush.msra.mxu0 0.0
        %432 = vmatpush.msra.mxu0 0.0
        %433 = vmatpush.msra.mxu0 0.0
        %434 = vmatpush.msra.mxu0 0.0
        %435 = vmatpush.msra.mxu0 0.0
        %436 = vmatpush.msra.mxu0 0.0
        %437 = vmatpush.msra.mxu0 0.0
        %438 = vmatpush.msra.mxu0 0.0
        %439 = vmatpush.msra.mxu0 0.0
        %440 = vmatpush.msra.mxu0 %v380
        %441 = vmatpush.msra.mxu0 %v378
        %442 = vmatpush.msra.mxu0 %v376
        %443 = vmatmul.f32.gmra.mxu0 %v387
        %v444 = vpop.f32.mrf.mxu0
        %v445 = vadd.f32 0.0, %v444
        %446 = vmatmul.f32.gmra.mxu0 %v390
        %v447 = vpop.f32.mrf.mxu0
        %v448 = vadd.f32 0.0, %v447
        %449 = vmatmul.f32.gmra.mxu0 %v393
        %v450 = vpop.f32.mrf.mxu0
        %v451 = vadd.f32 0.0, %v450
        %452 = vmatmul.f32.gmra.mxu0 %v396
        %v453 = vpop.f32.mrf.mxu0
        %v454 = vadd.f32 0.0, %v453
        %455 = vdwg.mxu0
        %v456 = vmul.f32 %v416, %v355
        %v457 = vmul.f32 %v445, %v356
        %v458 = vmul.f32 %v419, %v355
        %v459 = vmul.f32 %v448, %v356
        %v460 = vmul.f32 %v422, %v355
        %v461 = vmul.f32 %v451, %v356
        %v462 = vmul.f32 %v425, %v355
        %v463 = vmul.f32 %v454, %v356
        %v464 = vadd.f32 %v456, %v457
        %465 = vadd.xlane.f32.xlu0 %v464
        %v466 = vpop.xlane.xlu0 %465
        %v467 = vadd.f32 %v458, %v459
        %468 = vadd.xlane.f32.xlu0 %v467
        %v469 = vpop.xlane.xlu0 %468
        %v470 = vadd.f32 %v460, %v461
        %471 = vadd.xlane.f32.xlu0 %v470
        %v472 = vpop.xlane.xlu0 %471
        %v473 = vadd.f32 %v462, %v463
        %474 = vadd.xlane.f32.xlu0 %v473
        %v475 = vpop.xlane.xlu0 %474
        %v476 = vmul.f32 %v466, 0.0052083335
        %v477 = vmul.f32 %v469, 0.0052083335
        %v478 = vmul.f32 %v472, 0.0052083335
        %v479 = vmul.f32 %v475, 0.0052083335
        %v480 = vsub.f32 %v416, %v476
        %v481 = vsub.f32 %v445, %v476
        %v482 = vsub.f32 %v419, %v477
        %v483 = vsub.f32 %v448, %v477
        %v484 = vsub.f32 %v422, %v478
        %v485 = vsub.f32 %v451, %v478
        %v486 = vsub.f32 %v425, %v479
        %v487 = vsub.f32 %v454, %v479
        %v488 = vmul.f32 %v480, %v355
        %v489 = vmul.f32 %v481, %v356
        %v490 = vmul.f32 %v482, %v355
        %v491 = vmul.f32 %v483, %v356
        %v492 = vmul.f32 %v484, %v355
        %v493 = vmul.f32 %v485, %v356
        %v494 = vmul.f32 %v486, %v355
        %v495 = vmul.f32 %v487, %v356
        %v496 = vmul.f32 %v488, %v488
        %v497 = vmul.f32 %v489, %v489
        %v498 = vmul.f32 %v490, %v490
        %v499 = vmul.f32 %v491, %v491
        %v500 = vmul.f32 %v492, %v492
        %v501 = vmul.f32 %v493, %v493
        %v502 = vmul.f32 %v494, %v494
        %v503 = vmul.f32 %v495, %v495
        %v504 = vadd.f32 %v496, %v497
        %505 = vadd.xlane.f32.xlu0 %v504
        %v506 = vpop.xlane.xlu0 %505
        %v507 = vadd.f32 %v498, %v499
        %508 = vadd.xlane.f32.xlu0 %v507
        %v509 = vpop.xlane.xlu0 %508
        %v510 = vadd.f32 %v500, %v501
        %511 = vadd.xlane.f32.xlu0 %v510
        %v512 = vpop.xlane.xlu0 %511
        %v513 = vadd.f32 %v502, %v503
        %514 = vadd.xlane.f32.xlu0 %v513
        %v515 = vpop.xlane.xlu0 %514
        %v516 = vmul.f32 %v506, 0.0052083335
        %v517 = vmul.f32 %v509, 0.0052083335
        %v518 = vmul.f32 %v512, 0.0052083335
        %v519 = vmul.f32 %v515, 0.0052083335
        %v520 = vadd.f32 %v516, 1e-05
        %v521 = vadd.f32 %v517, 1e-05
        %v522 = vadd.f32 %v518, 1e-05
        %v523 = vadd.f32 %v519, 1e-05
        %v524 = vrsqrt.pop %v520
        %v525 = vmul.f32 %v524, %v520
        %v526 = vmul.f32 %v525, %v524
        %v527 = vmul.f32 0.5, %v526
        %v528 = vsub.f32 1.5, %v527
        %v529 = vmul.f32 %v524, %v528
        %vm530 = vweird.f32 %v520
        %vm531 = vweird.f32 %v524
        %vm532 = vmor %vm530, %vm531
        %v533 = vsel %vm532, %v524, %v529
        %v534 = vrsqrt.pop %v521
        %v535 = vmul.f32 %v534, %v521
        %v536 = vmul.f32 %v535, %v534
        %v537 = vmul.f32 0.5, %v536
        %v538 = vsub.f32 1.5, %v537
        %v539 = vmul.f32 %v534, %v538
        %vm540 = vweird.f32 %v521
        %vm541 = vweird.f32 %v534
        %vm542 = vmor %vm540, %vm541
        %v543 = vsel %vm542, %v534, %v539
        %v544 = vrsqrt.pop %v522
        %v545 = vmul.f32 %v544, %v522
        %v546 = vmul.f32 %v545, %v544
        %v547 = vmul.f32 0.5, %v546
        %v548 = vsub.f32 1.5, %v547
        %v549 = vmul.f32 %v544, %v548
        %vm550 = vweird.f32 %v522
        %vm551 = vweird.f32 %v544
        %vm552 = vmor %vm550, %vm551
        %v553 = vsel %vm552, %v544, %v549
        %v554 = vrsqrt.pop %v523
        %v555 = vmul.f32 %v554, %v523
        %v556 = vmul.f32 %v555, %v554
        %v557 = vmul.f32 0.5, %v556
        %v558 = vsub.f32 1.5, %v557
        %v559 = vmul.f32 %v554, %v558
        %vm560 = vweird.f32 %v523
        %vm561 = vweird.f32 %v554
        %vm562 = vmor %vm560, %vm561
        %v563 = vsel %vm562, %v554, %v559
        %v564 = vmul.f32 %v480, %v533
        %v565 = vmul.f32 %v481, %v533
        %v566 = vmul.f32 %v482, %v543
        %v567 = vmul.f32 %v483, %v543
        %v568 = vmul.f32 %v484, %v553
        %v569 = vmul.f32 %v485, %v553
        %v570 = vmul.f32 %v486, %v563
        %v571 = vmul.f32 %v487, %v563
        %573 = vset.pattern.permute.xlu0 0
        %574 = vperm.xlu0 %573, %v340
        %v575 = vpop.permute.xlu0 %574
        %578 = vset.pattern.permute.xlu0 0
        %579 = vperm.xlu0 %578, %v341
        %v580 = vpop.permute.xlu0 %579
        %583 = vset.pattern.permute.xlu0 0
        %584 = vperm.xlu0 %583, %v342
        %v585 = vpop.permute.xlu0 %584
        %588 = vset.pattern.permute.xlu0 0
        %589 = vperm.xlu0 %588, %v343
        %v590 = vpop.permute.xlu0 %589
        %v592 = vmul.f32 %v575, %v564
        %v593 = vmul.f32 %v575, %v565
        %v594 = vmul.f32 %v580, %v566
        %v595 = vmul.f32 %v580, %v567
        %v596 = vmul.f32 %v585, %v568
        %v597 = vmul.f32 %v585, %v569
        %v598 = vmul.f32 %v590, %v570
        %v599 = vmul.f32 %v590, %v571
        %600 = vset.pattern.permute.xlu0 1
        %601 = vperm.xlu0 %600, %v340
        %v602 = vpop.permute.xlu0 %601
        %604 = vset.pattern.permute.xlu0 1
        %605 = vperm.xlu0 %604, %v341
        %v606 = vpop.permute.xlu0 %605
        %608 = vset.pattern.permute.xlu0 1
        %609 = vperm.xlu0 %608, %v342
        %v610 = vpop.permute.xlu0 %609
        %612 = vset.pattern.permute.xlu0 1
        %613 = vperm.xlu0 %612, %v343
        %v614 = vpop.permute.xlu0 %613
        %v616 = vadd.f32 %v592, %v602
        %v617 = vadd.f32 %v593, %v602
        %v618 = vadd.f32 %v594, %v606
        %v619 = vadd.f32 %v595, %v606
        %v620 = vadd.f32 %v596, %v610
        %v621 = vadd.f32 %v597, %v610
        %v622 = vadd.f32 %v598, %v614
        %v623 = vadd.f32 %v599, %v614
        %vm624 = vcmp.ge.f32.partialorder %v616, 0.0
        %vm625 = vcmp.ge.f32.partialorder %v617, 0.0
        %vm626 = vcmp.ge.f32.partialorder %v618, 0.0
        %vm627 = vcmp.ge.f32.partialorder %v619, 0.0
        %vm628 = vcmp.ge.f32.partialorder %v620, 0.0
        %vm629 = vcmp.ge.f32.partialorder %v621, 0.0
        %vm630 = vcmp.ge.f32.partialorder %v622, 0.0
        %vm631 = vcmp.ge.f32.partialorder %v623, 0.0
        %v632 = vmul.f32 %v616, 0.2
        %v633 = vmul.f32 %v617, 0.2
        %v634 = vmul.f32 %v618, 0.2
        %v635 = vmul.f32 %v619, 0.2
        %v636 = vmul.f32 %v620, 0.2
        %v637 = vmul.f32 %v621, 0.2
        %v638 = vmul.f32 %v622, 0.2
        %v639 = vmul.f32 %v623, 0.2
        %v640 = vsel %vm624, %v616, %v632
        %v641 = vsel %vm625, %v617, %v633
        %v642 = vsel %vm626, %v618, %v634
        %v643 = vsel %vm627, %v619, %v635
        %v644 = vsel %vm628, %v620, %v636
        %v645 = vsel %vm629, %v621, %v637
        %v646 = vsel %vm630, %v622, %v638
        %v647 = vsel %vm631, %v623, %v639
        %v648 = vmul.f32 %v640, %v355
        %v649 = vmul.f32 %v641, %v356
        %v650 = vmul.f32 %v642, %v355
        %v651 = vmul.f32 %v643, %v356
        %v652 = vmul.f32 %v644, %v355
        %v653 = vmul.f32 %v645, %v356
        %v654 = vmul.f32 %v646, %v355
        %v655 = vmul.f32 %v647, %v356
        %656 = vrot.lane.b32.xlu0 %v648, 1
        %v657 = vpop.permute.xlu0 %656
        %658 = vrot.lane.b32.xlu0 %v650, 1
        %v659 = vpop.permute.xlu0 %658
        %660 = vrot.lane.b32.xlu0 %v652, 1
        %v661 = vpop.permute.xlu0 %660
        %662 = vrot.lane.b32.xlu0 %v654, 1
        %v663 = vpop.permute.xlu0 %662
        %664 = vrot.lane.b32.xlu0 %v649, 1
        %v665 = vpop.permute.xlu0 %664
        %666 = vrot.lane.b32.xlu0 %v651, 1
        %v667 = vpop.permute.xlu0 %666
        %668 = vrot.lane.b32.xlu0 %v653, 1
        %v669 = vpop.permute.xlu0 %668
        %670 = vrot.lane.b32.xlu0 %v655, 1
        %v671 = vpop.permute.xlu0 %670
        %vm672 = vcmp.lt.s32.totalorder %v345, 1
        %v673 = vsel %vm672, %v657, %v665
        %v674 = vsel %vm672, %v659, %v667
        %v675 = vsel %vm672, %v661, %v669
        %v676 = vsel %vm672, %v663, %v671
        %v677 = vsel %vm672, %v665, %v657
        %v678 = vsel %vm672, %v667, %v659
        %v679 = vsel %vm672, %v669, %v661
        %v680 = vsel %vm672, %v671, %v663
        %v681 = vsel %vm347, 1, 0
        %v682 = vsel %vm348, 1, 0
        %vm683 = vcmp.eq.s32.totalorder %v681, 1
        %vm684 = vcmp.eq.s32.totalorder %v682, 1
        %v685 = vsel %vm683, 0.0, %v677
        %v686 = vsel %vm684, 0.0, %v673
        %v687 = vsel %vm683, 0.0, %v678
        %v688 = vsel %vm684, 0.0, %v674
        %v689 = vsel %vm683, 0.0, %v679
        %v690 = vsel %vm684, 0.0, %v675
        %v691 = vsel %vm683, 0.0, %v680
        %v692 = vsel %vm684, 0.0, %v676
        %693 = vrot.lane.b32.xlu0 %v648, 127
        %v694 = vpop.permute.xlu0 %693
        %695 = vrot.lane.b32.xlu0 %v650, 127
        %v696 = vpop.permute.xlu0 %695
        %697 = vrot.lane.b32.xlu0 %v652, 127
        %v698 = vpop.permute.xlu0 %697
        %699 = vrot.lane.b32.xlu0 %v654, 127
        %v700 = vpop.permute.xlu0 %699
        %701 = vrot.lane.b32.xlu0 %v649, 127
        %v702 = vpop.permute.xlu0 %701
        %703 = vrot.lane.b32.xlu0 %v651, 127
        %v704 = vpop.permute.xlu0 %703
        %705 = vrot.lane.b32.xlu0 %v653, 127
        %v706 = vpop.permute.xlu0 %705
        %707 = vrot.lane.b32.xlu0 %v655, 127
        %v708 = vpop.permute.xlu0 %707
        %vm709 = vcmp.lt.s32.totalorder %v345, 127
        %v710 = vsel %vm709, %v694, %v702
        %v711 = vsel %vm709, %v696, %v704
        %v712 = vsel %vm709, %v698, %v706
        %v713 = vsel %vm709, %v700, %v708
        %v714 = vsel %vm709, %v702, %v694
        %v715 = vsel %vm709, %v704, %v696
        %v716 = vsel %vm709, %v706, %v698
        %v717 = vsel %vm709, %v708, %v700
        %v718 = vsel %vm349, 1, 0
        %v719 = vsel %vm350, 1, 0
        %vm720 = vcmp.eq.s32.totalorder %v718, 1
        %vm721 = vcmp.eq.s32.totalorder %v719, 1
        %v722 = vsel %vm720, 0.0, %v710
        %v723 = vsel %vm721, 0.0, %v714
        %v724 = vsel %vm720, 0.0, %v711
        %v725 = vsel %vm721, 0.0, %v715
        %v726 = vsel %vm720, 0.0, %v712
        %v727 = vsel %vm721, 0.0, %v716
        %v728 = vsel %vm720, 0.0, %v713
        %v729 = vsel %vm721, 0.0, %v717
        %730 = vst [vmem:[#allocation2] sm:$0xff] %v685
        %731 = vst [vmem:[#allocation2 + $0x8] sm:$0xff] %v686
        %732 = vst [vmem:[#allocation2 + $0x10] sm:$0xff] %v687
        %733 = vst [vmem:[#allocation2 + $0x18] sm:$0xff] %v688
        %734 = vst [vmem:[#allocation2 + $0x20] sm:$0xff] %v689
        %735 = vst [vmem:[#allocation2 + $0x28] sm:$0xff] %v690
        %736 = vst [vmem:[#allocation2 + $0x30] sm:$0xff] %v691
        %737 = vst [vmem:[#allocation2 + $0x38] sm:$0xff] %v692
        %738 = vst [vmem:[#allocation2 + $0x40] sm:$0xff] %v648
        %739 = vst [vmem:[#allocation2 + $0x48] sm:$0xff] %v649
        %740 = vst [vmem:[#allocation2 + $0x50] sm:$0xff] %v650
        %741 = vst [vmem:[#allocation2 + $0x58] sm:$0xff] %v651
        %742 = vst [vmem:[#allocation2 + $0x60] sm:$0xff] %v652
        %743 = vst [vmem:[#allocation2 + $0x68] sm:$0xff] %v653
        %744 = vst [vmem:[#allocation2 + $0x70] sm:$0xff] %v654
        %745 = vst [vmem:[#allocation2 + $0x78] sm:$0xff] %v655
        %746 = vst [vmem:[#allocation2 + $0x80] sm:$0xff] %v722
        %747 = vst [vmem:[#allocation2 + $0x88] sm:$0xff] %v723
        %748 = vst [vmem:[#allocation2 + $0x90] sm:$0xff] %v724
        %749 = vst [vmem:[#allocation2 + $0x98] sm:$0xff] %v725
        %750 = vst [vmem:[#allocation2 + $0xa0] sm:$0xff] %v726
        %751 = vst [vmem:[#allocation2 + $0xa8] sm:$0xff] %v727
        %752 = vst [vmem:[#allocation2 + $0xb0] sm:$0xff] %v728
        %753 = vst [vmem:[#allocation2 + $0xb8] sm:$0xff] %v729
        %v754 = vld [vmem:[%s4] sm:$0xff]
        %v755 = vld [vmem:[%s4 + $0x8] sm:$0xff]
        %v756 = vld [vmem:[%s4 + $0x10] sm:$0xff]
        %v757 = vld [vmem:[%s4 + $0x18] sm:$0xff]
        %v758 = vld [vmem:[#allocation2] sm:$0xff]
        %v759 = vld [vmem:[#allocation2 + $0x8] sm:$0xff]
        %v760 = vld [vmem:[#allocation2 + $0x10] sm:$0xff]
        %v761 = vld [vmem:[#allocation2 + $0x18] sm:$0xff]
        %v762 = vld [vmem:[#allocation2 + $0x20] sm:$0xff]
        %v763 = vld [vmem:[#allocation2 + $0x28] sm:$0xff]
        %v764 = vld [vmem:[#allocation2 + $0x30] sm:$0xff]
        %v765 = vld [vmem:[#allocation2 + $0x38] sm:$0xff]
        %v766 = vld [vmem:[#allocation2 + $0x40] sm:$0xff]
        %v767 = vld [vmem:[#allocation2 + $0x48] sm:$0xff]
        %v768 = vld [vmem:[#allocation2 + $0x50] sm:$0xff]
        %v769 = vld [vmem:[#allocation2 + $0x58] sm:$0xff]
        %v770 = vld [vmem:[#allocation2 + $0x60] sm:$0xff]
        %v771 = vld [vmem:[#allocation2 + $0x68] sm:$0xff]
        %v772 = vld [vmem:[#allocation2 + $0x70] sm:$0xff]
        %v773 = vld [vmem:[#allocation2 + $0x78] sm:$0xff]
        %v774 = vld [vmem:[#allocation2 + $0x80] sm:$0xff]
        %v775 = vld [vmem:[#allocation2 + $0x88] sm:$0xff]
        %v776 = vld [vmem:[#allocation2 + $0x90] sm:$0xff]
        %v777 = vld [vmem:[#allocation2 + $0x98] sm:$0xff]
        %v778 = vld [vmem:[#allocation2 + $0xa0] sm:$0xff]
        %v779 = vld [vmem:[#allocation2 + $0xa8] sm:$0xff]
        %v780 = vld [vmem:[#allocation2 + $0xb0] sm:$0xff]
        %v781 = vld [vmem:[#allocation2 + $0xb8] sm:$0xff]
        %v782 = vld [vmem:[%s5] sm:$0xff]
        %v783 = vld [vmem:[%s5 + $0x8] sm:$0xff]
        %v784 = vld [vmem:[%s5 + $0x10] sm:$0xff]
        %v785 = vld [vmem:[%s5 + $0x18] sm:$0xff]
        %787 = vset.pattern.permute.xlu0 0
        %788 = vperm.xlu0 %787, %v782
        %v789 = vpop.permute.xlu0 %788
        %792 = vset.pattern.permute.xlu0 0
        %793 = vperm.xlu0 %792, %v783
        %v794 = vpop.permute.xlu0 %793
        %797 = vset.pattern.permute.xlu0 0
        %798 = vperm.xlu0 %797, %v784
        %v799 = vpop.permute.xlu0 %798
        %802 = vset.pattern.permute.xlu0 0
        %803 = vperm.xlu0 %802, %v785
        %v804 = vpop.permute.xlu0 %803
        %vm806 = vcmask 785408
        %v808 = vsel %vm806, %v754, 0
        %v811 = vsel %vm806, %v755, 0
        %v814 = vsel %vm806, %v756, 0
        %v817 = vsel %vm806, %v757, 0
        %819 = vmatpush.msra.mxu0 0.0
        %820 = vmatpush.msra.mxu0 0.0
        %821 = vmatpush.msra.mxu0 0.0
        %822 = vmatpush.msra.mxu0 0.0
        %823 = vmatpush.msra.mxu0 %v780
        %824 = vmatpush.msra.mxu0 %v778
        %825 = vmatpush.msra.mxu0 %v776
        %826 = vmatpush.msra.mxu0 %v774
        %827 = vmatpush.msra.mxu0 %v772
        %828 = vmatpush.msra.mxu0 %v770
        %829 = vmatpush.msra.mxu0 %v768
        %830 = vmatpush.msra.mxu0 %v766
        %831 = vmatpush.msra.mxu0 %v764
        %832 = vmatpush.msra.mxu0 %v762
        %833 = vmatpush.msra.mxu0 %v760
        %834 = vmatpush.msra.mxu0 %v758
        %835 = vmatmul.f32.gmra.mxu0 %v808
        %v836 = vpop.f32.mrf.mxu0
        %v837 = vadd.f32 %v789, %v836
        %838 = vmatmul.f32.gmra.mxu0 %v811
        %v839 = vpop.f32.mrf.mxu0
        %v840 = vadd.f32 %v794, %v839
        %841 = vmatmul.f32.gmra.mxu0 %v814
        %v842 = vpop.f32.mrf.mxu0
        %v843 = vadd.f32 %v799, %v842
        %844 = vmatmul.f32.gmra.mxu0 %v817
        %v845 = vpop.f32.mrf.mxu0
        %v846 = vadd.f32 %v804, %v845
        %847 = vdwg.mxu0
        %848 = vmatpush.msra.mxu0 0.0
        %849 = vmatpush.msra.mxu0 0.0
        %850 = vmatpush.msra.mxu0 0.0
        %851 = vmatpush.msra.mxu0 0.0
        %852 = vmatpush.msra.mxu0 %v781
        %853 = vmatpush.msra.mxu0 %v779
        %854 = vmatpush.msra.mxu0 %v777
        %855 = vmatpush.msra.mxu0 %v775
        %856 = vmatpush.msra.mxu0 %v773
        %857 = vmatpush.msra.mxu0 %v771
        %858 = vmatpush.msra.mxu0 %v769
        %859 = vmatpush.msra.mxu0 %v767
        %860 = vmatpush.msra.mxu0 %v765
        %861 = vmatpush.msra.mxu0 %v763
        %862 = vmatpush.msra.mxu0 %v761
        %863 = vmatpush.msra.mxu0 %v759
        %864 = vmatmul.f32.gmra.mxu0 %v808
        %v865 = vpop.f32.mrf.mxu0
        %v866 = vadd.f32 %v789, %v865
        %867 = vmatmul.f32.gmra.mxu0 %v811
        %v868 = vpop.f32.mrf.mxu0
        %v869 = vadd.f32 %v794, %v868
        %870 = vmatmul.f32.gmra.mxu0 %v814
        %v871 = vpop.f32.mrf.mxu0
        %v872 = vadd.f32 %v799, %v871
        %873 = vmatmul.f32.gmra.mxu0 %v817
        %v874 = vpop.f32.mrf.mxu0
        %v875 = vadd.f32 %v804, %v874
        %876 = vdwg.mxu0
        %v877 = vmul.f32 %v837, %v355
        %v878 = vmul.f32 %v866, %v356
        %v879 = vmul.f32 %v840, %v355
        %v880 = vmul.f32 %v869, %v356
        %v881 = vmul.f32 %v843, %v355
        %v882 = vmul.f32 %v872, %v356
        %v883 = vmul.f32 %v846, %v355
        %v884 = vmul.f32 %v875, %v356
        %v885 = vadd.f32 %v877, %v878
        %886 = vadd.xlane.f32.xlu0 %v885
        %v887 = vpop.xlane.xlu0 %886
        %v888 = vadd.f32 %v879, %v880
        %889 = vadd.xlane.f32.xlu0 %v888
        %v890 = vpop.xlane.xlu0 %889
        %v891 = vadd.f32 %v881, %v882
        %892 = vadd.xlane.f32.xlu0 %v891
        %v893 = vpop.xlane.xlu0 %892
        %v894 = vadd.f32 %v883, %v884
        %895 = vadd.xlane.f32.xlu0 %v894
        %v896 = vpop.xlane.xlu0 %895
        %v897 = vmul.f32 %v887, 0.0052083335
        %v898 = vmul.f32 %v890, 0.0052083335
        %v899 = vmul.f32 %v893, 0.0052083335
        %v900 = vmul.f32 %v896, 0.0052083335
        %v901 = vsub.f32 %v837, %v897
        %v902 = vsub.f32 %v866, %v897
        %v903 = vsub.f32 %v840, %v898
        %v904 = vsub.f32 %v869, %v898
        %v905 = vsub.f32 %v843, %v899
        %v906 = vsub.f32 %v872, %v899
        %v907 = vsub.f32 %v846, %v900
        %v908 = vsub.f32 %v875, %v900
        %v909 = vmul.f32 %v901, %v355
        %v910 = vmul.f32 %v902, %v356
        %v911 = vmul.f32 %v903, %v355
        %v912 = vmul.f32 %v904, %v356
        %v913 = vmul.f32 %v905, %v355
        %v914 = vmul.f32 %v906, %v356
        %v915 = vmul.f32 %v907, %v355
        %v916 = vmul.f32 %v908, %v356
        %v917 = vmul.f32 %v909, %v909
        %v918 = vmul.f32 %v910, %v910
        %v919 = vmul.f32 %v911, %v911
        %v920 = vmul.f32 %v912, %v912
        %v921 = vmul.f32 %v913, %v913
        %v922 = vmul.f32 %v914, %v914
        %v923 = vmul.f32 %v915, %v915
        %v924 = vmul.f32 %v916, %v916
        %v925 = vadd.f32 %v917, %v918
        %926 = vadd.xlane.f32.xlu0 %v925
        %v927 = vpop.xlane.xlu0 %926
        %v928 = vadd.f32 %v919, %v920
        %929 = vadd.xlane.f32.xlu0 %v928
        %v930 = vpop.xlane.xlu0 %929
        %v931 = vadd.f32 %v921, %v922
        %932 = vadd.xlane.f32.xlu0 %v931
        %v933 = vpop.xlane.xlu0 %932
        %v934 = vadd.f32 %v923, %v924
        %935 = vadd.xlane.f32.xlu0 %v934
        %v936 = vpop.xlane.xlu0 %935
        %v937 = vmul.f32 %v927, 0.0052083335
        %v938 = vmul.f32 %v930, 0.0052083335
        %v939 = vmul.f32 %v933, 0.0052083335
        %v940 = vmul.f32 %v936, 0.0052083335
        %v941 = vadd.f32 %v937, 1e-05
        %v942 = vadd.f32 %v938, 1e-05
        %v943 = vadd.f32 %v939, 1e-05
        %v944 = vadd.f32 %v940, 1e-05
        %v945 = vrsqrt.pop %v941
        %v946 = vmul.f32 %v945, %v941
        %v947 = vmul.f32 %v946, %v945
        %v948 = vmul.f32 0.5, %v947
        %v949 = vsub.f32 1.5, %v948
        %v950 = vmul.f32 %v945, %v949
        %vm951 = vweird.f32 %v941
        %vm952 = vweird.f32 %v945
        %vm953 = vmor %vm951, %vm952
        %v954 = vsel %vm953, %v945, %v950
        %v955 = vrsqrt.pop %v942
        %v956 = vmul.f32 %v955, %v942
        %v957 = vmul.f32 %v956, %v955
        %v958 = vmul.f32 0.5, %v957
        %v959 = vsub.f32 1.5, %v958
        %v960 = vmul.f32 %v955, %v959
        %vm961 = vweird.f32 %v942
        %vm962 = vweird.f32 %v955
        %vm963 = vmor %vm961, %vm962
        %v964 = vsel %vm963, %v955, %v960
        %v965 = vrsqrt.pop %v943
        %v966 = vmul.f32 %v965, %v943
        %v967 = vmul.f32 %v966, %v965
        %v968 = vmul.f32 0.5, %v967
        %v969 = vsub.f32 1.5, %v968
        %v970 = vmul.f32 %v965, %v969
        %vm971 = vweird.f32 %v943
        %vm972 = vweird.f32 %v965
        %vm973 = vmor %vm971, %vm972
        %v974 = vsel %vm973, %v965, %v970
        %v975 = vrsqrt.pop %v944
        %v976 = vmul.f32 %v975, %v944
        %v977 = vmul.f32 %v976, %v975
        %v978 = vmul.f32 0.5, %v977
        %v979 = vsub.f32 1.5, %v978
        %v980 = vmul.f32 %v975, %v979
        %vm981 = vweird.f32 %v944
        %vm982 = vweird.f32 %v975
        %vm983 = vmor %vm981, %vm982
        %v984 = vsel %vm983, %v975, %v980
        %v985 = vmul.f32 %v901, %v954
        %v986 = vmul.f32 %v902, %v954
        %v987 = vmul.f32 %v903, %v964
        %v988 = vmul.f32 %v904, %v964
        %v989 = vmul.f32 %v905, %v974
        %v990 = vmul.f32 %v906, %v974
        %v991 = vmul.f32 %v907, %v984
        %v992 = vmul.f32 %v908, %v984
        %993 = vset.pattern.permute.xlu0 2
        %994 = vperm.xlu0 %993, %v340
        %v995 = vpop.permute.xlu0 %994
        %997 = vset.pattern.permute.xlu0 2
        %998 = vperm.xlu0 %997, %v341
        %v999 = vpop.permute.xlu0 %998
        %1001 = vset.pattern.permute.xlu0 2
        %1002 = vperm.xlu0 %1001, %v342
        %v1003 = vpop.permute.xlu0 %1002
        %1005 = vset.pattern.permute.xlu0 2
        %1006 = vperm.xlu0 %1005, %v343
        %v1007 = vpop.permute.xlu0 %1006
        %v1009 = vmul.f32 %v995, %v985
        %v1010 = vmul.f32 %v995, %v986
        %v1011 = vmul.f32 %v999, %v987
        %v1012 = vmul.f32 %v999, %v988
        %v1013 = vmul.f32 %v1003, %v989
        %v1014 = vmul.f32 %v1003, %v990
        %v1015 = vmul.f32 %v1007, %v991
        %v1016 = vmul.f32 %v1007, %v992
        %1017 = vset.pattern.permute.xlu0 3
        %1018 = vperm.xlu0 %1017, %v340
        %v1019 = vpop.permute.xlu0 %1018
        %1021 = vset.pattern.permute.xlu0 3
        %1022 = vperm.xlu0 %1021, %v341
        %v1023 = vpop.permute.xlu0 %1022
        %1025 = vset.pattern.permute.xlu0 3
        %1026 = vperm.xlu0 %1025, %v342
        %v1027 = vpop.permute.xlu0 %1026
        %1029 = vset.pattern.permute.xlu0 3
        %1030 = vperm.xlu0 %1029, %v343
        %v1031 = vpop.permute.xlu0 %1030
        %v1033 = vadd.f32 %v1009, %v1019
        %v1034 = vadd.f32 %v1010, %v1019
        %v1035 = vadd.f32 %v1011, %v1023
        %v1036 = vadd.f32 %v1012, %v1023
        %v1037 = vadd.f32 %v1013, %v1027
        %v1038 = vadd.f32 %v1014, %v1027
        %v1039 = vadd.f32 %v1015, %v1031
        %v1040 = vadd.f32 %v1016, %v1031
        %vm1041 = vcmp.ge.f32.partialorder %v1033, 0.0
        %vm1042 = vcmp.ge.f32.partialorder %v1034, 0.0
        %vm1043 = vcmp.ge.f32.partialorder %v1035, 0.0
        %vm1044 = vcmp.ge.f32.partialorder %v1036, 0.0
        %vm1045 = vcmp.ge.f32.partialorder %v1037, 0.0
        %vm1046 = vcmp.ge.f32.partialorder %v1038, 0.0
        %vm1047 = vcmp.ge.f32.partialorder %v1039, 0.0
        %vm1048 = vcmp.ge.f32.partialorder %v1040, 0.0
        %v1049 = vmul.f32 %v1033, 0.2
        %v1050 = vmul.f32 %v1034, 0.2
        %v1051 = vmul.f32 %v1035, 0.2
        %v1052 = vmul.f32 %v1036, 0.2
        %v1053 = vmul.f32 %v1037, 0.2
        %v1054 = vmul.f32 %v1038, 0.2
        %v1055 = vmul.f32 %v1039, 0.2
        %v1056 = vmul.f32 %v1040, 0.2
        %v1057 = vsel %vm1041, %v1033, %v1049
        %v1058 = vsel %vm1042, %v1034, %v1050
        %v1059 = vsel %vm1043, %v1035, %v1051
        %v1060 = vsel %vm1044, %v1036, %v1052
        %v1061 = vsel %vm1045, %v1037, %v1053
        %v1062 = vsel %vm1046, %v1038, %v1054
        %v1063 = vsel %vm1047, %v1039, %v1055
        %v1064 = vsel %vm1048, %v1040, %v1056
        %v1065 = vmul.f32 %v1057, %v355
        %v1066 = vmul.f32 %v1058, %v356
        %v1067 = vmul.f32 %v1059, %v355
        %v1068 = vmul.f32 %v1060, %v356
        %v1069 = vmul.f32 %v1061, %v355
        %v1070 = vmul.f32 %v1062, %v356
        %v1071 = vmul.f32 %v1063, %v355
        %v1072 = vmul.f32 %v1064, %v356
        %1073 = vrot.lane.b32.xlu0 %v1065, 1
        %v1074 = vpop.permute.xlu0 %1073
        %1075 = vrot.lane.b32.xlu0 %v1067, 1
        %v1076 = vpop.permute.xlu0 %1075
        %1077 = vrot.lane.b32.xlu0 %v1069, 1
        %v1078 = vpop.permute.xlu0 %1077
        %1079 = vrot.lane.b32.xlu0 %v1071, 1
        %v1080 = vpop.permute.xlu0 %1079
        %1081 = vrot.lane.b32.xlu0 %v1066, 1
        %v1082 = vpop.permute.xlu0 %1081
        %1083 = vrot.lane.b32.xlu0 %v1068, 1
        %v1084 = vpop.permute.xlu0 %1083
        %1085 = vrot.lane.b32.xlu0 %v1070, 1
        %v1086 = vpop.permute.xlu0 %1085
        %1087 = vrot.lane.b32.xlu0 %v1072, 1
        %v1088 = vpop.permute.xlu0 %1087
        %v1089 = vsel %vm672, %v1074, %v1082
        %v1090 = vsel %vm672, %v1076, %v1084
        %v1091 = vsel %vm672, %v1078, %v1086
        %v1092 = vsel %vm672, %v1080, %v1088
        %v1093 = vsel %vm672, %v1082, %v1074
        %v1094 = vsel %vm672, %v1084, %v1076
        %v1095 = vsel %vm672, %v1086, %v1078
        %v1096 = vsel %vm672, %v1088, %v1080
        %v1097 = vsel %vm683, 0.0, %v1093
        %v1098 = vsel %vm684, 0.0, %v1089
        %v1099 = vsel %vm683, 0.0, %v1094
        %v1100 = vsel %vm684, 0.0, %v1090
        %v1101 = vsel %vm683, 0.0, %v1095
        %v1102 = vsel %vm684, 0.0, %v1091
        %v1103 = vsel %vm683, 0.0, %v1096
        %v1104 = vsel %vm684, 0.0, %v1092
        %1105 = vrot.lane.b32.xlu0 %v1065, 127
        %v1106 = vpop.permute.xlu0 %1105
        %1107 = vrot.lane.b32.xlu0 %v1067, 127
        %v1108 = vpop.permute.xlu0 %1107
        %1109 = vrot.lane.b32.xlu0 %v1069, 127
        %v1110 = vpop.permute.xlu0 %1109
        %1111 = vrot.lane.b32.xlu0 %v1071, 127
        %v1112 = vpop.permute.xlu0 %1111
        %1113 = vrot.lane.b32.xlu0 %v1066, 127
        %v1114 = vpop.permute.xlu0 %1113
        %1115 = vrot.lane.b32.xlu0 %v1068, 127
        %v1116 = vpop.permute.xlu0 %1115
        %1117 = vrot.lane.b32.xlu0 %v1070, 127
        %v1118 = vpop.permute.xlu0 %1117
        %1119 = vrot.lane.b32.xlu0 %v1072, 127
        %v1120 = vpop.permute.xlu0 %1119
        %v1121 = vsel %vm709, %v1106, %v1114
        %v1122 = vsel %vm709, %v1108, %v1116
        %v1123 = vsel %vm709, %v1110, %v1118
        %v1124 = vsel %vm709, %v1112, %v1120
        %v1125 = vsel %vm709, %v1114, %v1106
        %v1126 = vsel %vm709, %v1116, %v1108
        %v1127 = vsel %vm709, %v1118, %v1110
        %v1128 = vsel %vm709, %v1120, %v1112
        %v1129 = vsel %vm720, 0.0, %v1121
        %v1130 = vsel %vm721, 0.0, %v1125
        %v1131 = vsel %vm720, 0.0, %v1122
        %v1132 = vsel %vm721, 0.0, %v1126
        %v1133 = vsel %vm720, 0.0, %v1123
        %v1134 = vsel %vm721, 0.0, %v1127
        %v1135 = vsel %vm720, 0.0, %v1124
        %v1136 = vsel %vm721, 0.0, %v1128
        %1137 = vst [vmem:[#allocation2] sm:$0xff] %v1097
        %1138 = vst [vmem:[#allocation2 + $0x8] sm:$0xff] %v1098
        %1139 = vst [vmem:[#allocation2 + $0x10] sm:$0xff] %v1099
        %1140 = vst [vmem:[#allocation2 + $0x18] sm:$0xff] %v1100
        %1141 = vst [vmem:[#allocation2 + $0x20] sm:$0xff] %v1101
        %1142 = vst [vmem:[#allocation2 + $0x28] sm:$0xff] %v1102
        %1143 = vst [vmem:[#allocation2 + $0x30] sm:$0xff] %v1103
        %1144 = vst [vmem:[#allocation2 + $0x38] sm:$0xff] %v1104
        %1145 = vst [vmem:[#allocation2 + $0x40] sm:$0xff] %v1065
        %1146 = vst [vmem:[#allocation2 + $0x48] sm:$0xff] %v1066
        %1147 = vst [vmem:[#allocation2 + $0x50] sm:$0xff] %v1067
        %1148 = vst [vmem:[#allocation2 + $0x58] sm:$0xff] %v1068
        %1149 = vst [vmem:[#allocation2 + $0x60] sm:$0xff] %v1069
        %1150 = vst [vmem:[#allocation2 + $0x68] sm:$0xff] %v1070
        %1151 = vst [vmem:[#allocation2 + $0x70] sm:$0xff] %v1071
        %1152 = vst [vmem:[#allocation2 + $0x78] sm:$0xff] %v1072
        %1153 = vst [vmem:[#allocation2 + $0x80] sm:$0xff] %v1129
        %1154 = vst [vmem:[#allocation2 + $0x88] sm:$0xff] %v1130
        %1155 = vst [vmem:[#allocation2 + $0x90] sm:$0xff] %v1131
        %1156 = vst [vmem:[#allocation2 + $0x98] sm:$0xff] %v1132
        %1157 = vst [vmem:[#allocation2 + $0xa0] sm:$0xff] %v1133
        %1158 = vst [vmem:[#allocation2 + $0xa8] sm:$0xff] %v1134
        %1159 = vst [vmem:[#allocation2 + $0xb0] sm:$0xff] %v1135
        %1160 = vst [vmem:[#allocation2 + $0xb8] sm:$0xff] %v1136
        %v1161 = vld [vmem:[%s6] sm:$0xff]
        %v1162 = vld [vmem:[%s6 + $0x8] sm:$0xff]
        %v1163 = vld [vmem:[%s6 + $0x10] sm:$0xff]
        %v1164 = vld [vmem:[%s6 + $0x18] sm:$0xff]
        %v1165 = vld [vmem:[#allocation2] sm:$0xff]
        %v1166 = vld [vmem:[#allocation2 + $0x8] sm:$0xff]
        %v1167 = vld [vmem:[#allocation2 + $0x10] sm:$0xff]
        %v1168 = vld [vmem:[#allocation2 + $0x18] sm:$0xff]
        %v1169 = vld [vmem:[#allocation2 + $0x20] sm:$0xff]
        %v1170 = vld [vmem:[#allocation2 + $0x28] sm:$0xff]
        %v1171 = vld [vmem:[#allocation2 + $0x30] sm:$0xff]
        %v1172 = vld [vmem:[#allocation2 + $0x38] sm:$0xff]
        %v1173 = vld [vmem:[#allocation2 + $0x40] sm:$0xff]
        %v1174 = vld [vmem:[#allocation2 + $0x48] sm:$0xff]
        %v1175 = vld [vmem:[#allocation2 + $0x50] sm:$0xff]
        %v1176 = vld [vmem:[#allocation2 + $0x58] sm:$0xff]
        %v1177 = vld [vmem:[#allocation2 + $0x60] sm:$0xff]
        %v1178 = vld [vmem:[#allocation2 + $0x68] sm:$0xff]
        %v1179 = vld [vmem:[#allocation2 + $0x70] sm:$0xff]
        %v1180 = vld [vmem:[#allocation2 + $0x78] sm:$0xff]
        %v1181 = vld [vmem:[#allocation2 + $0x80] sm:$0xff]
        %v1182 = vld [vmem:[#allocation2 + $0x88] sm:$0xff]
        %v1183 = vld [vmem:[#allocation2 + $0x90] sm:$0xff]
        %v1184 = vld [vmem:[#allocation2 + $0x98] sm:$0xff]
        %v1185 = vld [vmem:[#allocation2 + $0xa0] sm:$0xff]
        %v1186 = vld [vmem:[#allocation2 + $0xa8] sm:$0xff]
        %v1187 = vld [vmem:[#allocation2 + $0xb0] sm:$0xff]
        %v1188 = vld [vmem:[#allocation2 + $0xb8] sm:$0xff]
        %v1189 = vld [vmem:[%s7] sm:$0xff]
        %v1190 = vld [vmem:[%s7 + $0x8] sm:$0xff]
        %v1191 = vld [vmem:[%s7 + $0x10] sm:$0xff]
        %v1192 = vld [vmem:[%s7 + $0x18] sm:$0xff]
        %1194 = vset.pattern.permute.xlu0 0
        %1195 = vperm.xlu0 %1194, %v1189
        %v1196 = vpop.permute.xlu0 %1195
        %1199 = vset.pattern.permute.xlu0 0
        %1200 = vperm.xlu0 %1199, %v1190
        %v1201 = vpop.permute.xlu0 %1200
        %1204 = vset.pattern.permute.xlu0 0
        %1205 = vperm.xlu0 %1204, %v1191
        %v1206 = vpop.permute.xlu0 %1205
        %1209 = vset.pattern.permute.xlu0 0
        %1210 = vperm.xlu0 %1209, %v1192
        %v1211 = vpop.permute.xlu0 %1210
        %v1214 = vsel %vm806, %v1161, 0
        %v1217 = vsel %vm806, %v1162, 0
        %v1220 = vsel %vm806, %v1163, 0
        %v1223 = vsel %vm806, %v1164, 0
        %1225 = vmatpush.msra.mxu0 0.0
        %1226 = vmatpush.msra.mxu0 0.0
        %1227 = vmatpush.msra.mxu0 0.0
        %1228 = vmatpush.msra.mxu0 0.0
        %1229 = vmatpush.msra.mxu0 %v1187
        %1230 = vmatpush.msra.mxu0 %v1185
        %1231 = vmatpush.msra.mxu0 %v1183
        %1232 = vmatpush.msra.mxu0 %v1181
        %1233 = vmatpush.msra.mxu0 %v1179
        %1234 = vmatpush.msra.mxu0 %v1177
        %1235 = vmatpush.msra.mxu0 %v1175
        %1236 = vmatpush.msra.mxu0 %v1173
        %1237 = vmatpush.msra.mxu0 %v1171
        %1238 = vmatpush.msra.mxu0 %v1169
        %1239 = vmatpush.msra.mxu0 %v1167
        %1240 = vmatpush.msra.mxu0 %v1165
        %1241 = vmatmul.f32.gmra.mxu0 %v1214
        %v1242 = vpop.f32.mrf.mxu0
        %v1243 = vadd.f32 %v1196, %v1242
        %1244 = vmatmul.f32.gmra.mxu0 %v1217
        %v1245 = vpop.f32.mrf.mxu0
        %v1246 = vadd.f32 %v1201, %v1245
        %1247 = vmatmul.f32.gmra.mxu0 %v1220
        %v1248 = vpop.f32.mrf.mxu0
        %v1249 = vadd.f32 %v1206, %v1248
        %1250 = vmatmul.f32.gmra.mxu0 %v1223
        %v1251 = vpop.f32.mrf.mxu0
        %v1252 = vadd.f32 %v1211, %v1251
        %1253 = vdwg.mxu0
        %1254 = vmatpush.msra.mxu0 0.0
        %1255 = vmatpush.msra.mxu0 0.0
        %1256 = vmatpush.msra.mxu0 0.0
        %1257 = vmatpush.msra.mxu0 0.0
        %1258 = vmatpush.msra.mxu0 %v1188
        %1259 = vmatpush.msra.mxu0 %v1186
        %1260 = vmatpush.msra.mxu0 %v1184
        %1261 = vmatpush.msra.mxu0 %v1182
        %1262 = vmatpush.msra.mxu0 %v1180
        %1263 = vmatpush.msra.mxu0 %v1178
        %1264 = vmatpush.msra.mxu0 %v1176
        %1265 = vmatpush.msra.mxu0 %v1174
        %1266 = vmatpush.msra.mxu0 %v1172
        %1267 = vmatpush.msra.mxu0 %v1170
        %1268 = vmatpush.msra.mxu0 %v1168
        %1269 = vmatpush.msra.mxu0 %v1166
        %1270 = vmatmul.f32.gmra.mxu0 %v1214
        %v1271 = vpop.f32.mrf.mxu0
        %v1272 = vadd.f32 %v1196, %v1271
        %1273 = vmatmul.f32.gmra.mxu0 %v1217
        %v1274 = vpop.f32.mrf.mxu0
        %v1275 = vadd.f32 %v1201, %v1274
        %1276 = vmatmul.f32.gmra.mxu0 %v1220
        %v1277 = vpop.f32.mrf.mxu0
        %v1278 = vadd.f32 %v1206, %v1277
        %1279 = vmatmul.f32.gmra.mxu0 %v1223
        %v1280 = vpop.f32.mrf.mxu0
        %v1281 = vadd.f32 %v1211, %v1280
        %1282 = vdwg.mxu0
        %v1283 = vadd.f32 %v1243, %v416
        %v1284 = vadd.f32 %v1272, %v445
        %v1285 = vadd.f32 %v1246, %v419
        %v1286 = vadd.f32 %v1275, %v448
        %v1287 = vadd.f32 %v1249, %v422
        %v1288 = vadd.f32 %v1278, %v451
        %v1289 = vadd.f32 %v1252, %v425
        %v1290 = vadd.f32 %v1281, %v454
        %v1291 = vmul.f32 %v1283, 0.70710677
        %v1292 = vmul.f32 %v1284, 0.70710677
        %v1293 = vmul.f32 %v1285, 0.70710677
        %v1294 = vmul.f32 %v1286, 0.70710677
        %v1295 = vmul.f32 %v1287, 0.70710677
        %v1296 = vmul.f32 %v1288, 0.70710677
        %v1297 = vmul.f32 %v1289, 0.70710677
        %v1298 = vmul.f32 %v1290, 0.70710677
        %v1300 = vperm.slane %v339, 0
        %v1301 = vperm.slane %v339, 1
        %v1304 = vmul.f32 %v1291, %v1300
        %v1305 = vmul.f32 %v1292, %v1301
        %v1306 = vmul.f32 %v1293, %v1300
        %v1307 = vmul.f32 %v1294, %v1301
        %v1308 = vmul.f32 %v1295, %v1300
        %v1309 = vmul.f32 %v1296, %v1301
        %v1310 = vmul.f32 %v1297, %v1300
        %v1311 = vmul.f32 %v1298, %v1301
        %1312 = vst [vmem:[%s324] sm:$0xff] %v1304
        %1313 = vst [vmem:[%s324 + $0x8] sm:$0xff] %v1305
        %1314 = vst [vmem:[%s324 + $0x10] sm:$0xff] %v1306
        %1315 = vst [vmem:[%s324 + $0x18] sm:$0xff] %v1307
        %1316 = vst [vmem:[%s324 + $0x20] sm:$0xff] %v1308
        %1317 = vst [vmem:[%s324 + $0x28] sm:$0xff] %v1309
        %1318 = vst [vmem:[%s324 + $0x30] sm:$0xff] %v1310
        %1319 = vst [vmem:[%s324 + $0x38] sm:$0xff] %v1311
        %s1320 = sand.u32 %s213, 1
        %s1321 = scalar_lea.sflag [#allocation4], %s1320
        %s1322 = sand.u32 %s213, 1
        %s1323 = smul.addr %s1322, 64
        %s1324 = scalar_lea.vmem [#allocation3], %s1323
        // Predicated region
        $region53: #{conditional_embedding.1} parent=51 // pred_check
          %p1325 = pneg %p223
        $region54: #{conditional_embedding.1} parent=51 // pred_check_branch
          %1327 = sbr.rel (%p1325) target = $region56
        $region55: #{conditional_embedding.1} parent=51 // pred_region
          %1329 = vsyncadd %s1321, 0
          %s1330 = smul.addr %s22, 8
          %s1331 = smul.addr %s1330, 8
          %s1332 = scalar_lea.hbm %s8, %s1331
          %s1333 = sshll.u32 %s1324, 4
          %s1334 = int_to_ptr.vmem [resolvable:$true] %s1333
          %s1335 = sshll.u32 %s1332, 4
          %s1336 = int_to_ptr.hbm [resolvable:$true] %s1335
          %1341 = dma.vmem_to_hbm [thread:$0]  %s1334, 1024, %s1336, %s1321, 256, 256, 16
        $region56: #{conditional_embedding.1} parent=51 // pred_fallthru
          _
      $region52: #{conditional_embedding.1} parent=5 // pred_fallthru
        _
      %p1342 = scmp.le.s32.totalorder 2, %s17
      // Predicated region
      $region57: #{conditional_embedding.1} parent=5 // pred_check
        %p1343 = pneg %p1342
      $region58: #{conditional_embedding.1} parent=5 // pred_check_branch
        %1345 = sbr.rel (%p1343) target = $region60
      $region59: #{conditional_embedding.1} parent=5 // pred_region
        %s1346 = ssub.s32 %s17, 2
        // Predicated region
        $region61: #{conditional_embedding.1} parent=59 // pred_check
          %p1347 = pneg %p229
        $region62: #{conditional_embedding.1} parent=59 // pred_check_branch
          %1349 = sbr.rel (%p1347) target = $region64
        $region63: #{conditional_embedding.1} parent=59 // pred_region
          %s1350 = sand.u32 %s214, 1
          %s1351 = scalar_lea.sflag [#allocation4], %s1350
          %s1352 = sand.u32 %s214, 1
          %s1353 = smul.addr %s1352, 64
          %s1354 = scalar_lea.vmem [#allocation3], %s1353
          %1356 = dma.done %s1351, 1024
        $region64: #{conditional_embedding.1} parent=59 // pred_fallthru
          _
      $region60: #{conditional_embedding.1} parent=5 // pred_fallthru
        _
    $region6: #{conditional_embedding.1} parent=1 // loop_footer
      %s21 = sadd.s32 1, %s17
    $region7: #{conditional_embedding.1} parent=1 // loop_footer_branch
      %16 = sbr.rel target = $region3
    $region8: #{conditional_embedding.1} parent=1 // loop_exit
      _
    %1357 = vsyncpa [#allocation4], 1
    %s1358 = scalar_lea.sflag [#allocation4], 1
    %1359 = vsyncpa %s1358, 1

</llo_original>
